<compile_context>
chip_gen: v5e
topology: v5e:2x2
jax: 0.10.0
libtpu: 0.0.40
codegen_flags: <defaults>
</compile_context>

<pallas_src>
from functools import partial

import jax
import jax.numpy as jnp
from jax.experimental import pallas as pl
from jax.experimental.pallas import tpu as pltpu

INPUT_DIM = 18
HIDDEN = 128
NUM_HEADS = 4
HEAD_DIM = HIDDEN // NUM_HEADS
LN_EPS = 1e-5


def _set_encoder_kernel(x_ref, wfc_ref, wbig_ref, bias_ref, o_ref, *, set_len):
    m, _ = x_ref.shape
    s = set_len
    tb = m // s
    H = HIDDEN
    HD = HEAD_DIM
    f32 = jnp.float32
    bf16 = jnp.bfloat16

    # packed biases / LN params (f32): [bfc | bin(3H, Q part pre-scaled) | bout | gamma | beta | b1 | b2]
    bfc = bias_ref[:, 0 * H:1 * H]
    b_in = bias_ref[:, 1 * H:4 * H]
    b_out = bias_ref[:, 4 * H:5 * H]
    gamma = bias_ref[:, 5 * H:6 * H]
    beta = bias_ref[:, 6 * H:7 * H]
    b1 = bias_ref[:, 7 * H:8 * H]
    b2 = bias_ref[:, 8 * H:9 * H]

    # --- fc (bf16 MXU, f32 accumulate) -------------------------------------------
    x = x_ref[...].astype(bf16)                                            # (m, 18)
    h = jnp.dot(x, wfc_ref[...], preferred_element_type=f32) + bfc         # (m, H) f32

    # --- multi-head self-attention (PyTorch nn.MultiheadAttention semantics) -----
    # packed bf16 weight slab columns: [win(3H, Q pre-scaled by 1/sqrt(hd)) | wout(H) | w1(H) | w2(H)]
    qkv = jnp.dot(h.astype(bf16), wbig_ref[:, 0:3 * H],
                  preferred_element_type=f32) + b_in                       # (m, 3H) f32

    attn = None
    for hh in range(NUM_HEADS):                                            # static unroll, 4 heads
        # (m, HD) -> (tb, S, HD): pure sublane split (S == 8), free view.
        q = qkv[:, hh * HD:(hh + 1) * HD].reshape(tb, s, HD).astype(bf16)
        k = qkv[:, H + hh * HD:H + (hh + 1) * HD].reshape(tb, s, HD).astype(bf16)
        v = qkv[:, 2 * H + hh * HD:2 * H + (hh + 1) * HD].reshape(tb, s, HD).astype(bf16)

        # Block-diagonal scores: batch over sets, contract head_dim (no explicit k.T).
        sc = jax.lax.dot_general(q, k, (((2,), (2,)), ((0,), (0,))),
                                 preferred_element_type=f32)               # (tb, S, S) f32
        sc = sc - jnp.max(sc, axis=-1, keepdims=True)
        p = jnp.exp(sc)
        p = p * pl.reciprocal(jnp.sum(p, axis=-1, keepdims=True), approx=True)

        o = jax.lax.dot_general(p.astype(bf16), v, (((2,), (1,)), ((0,), (0,))),
                                preferred_element_type=f32)                # (tb, S, HD) f32

        # Fold the output projection into the head loop (sum of per-head partial products).
        contrib = jnp.dot(o.reshape(m, HD).astype(bf16),
                          wbig_ref[hh * HD:(hh + 1) * HD, 3 * H:4 * H],
                          preferred_element_type=f32)                      # (m, H)
        attn = contrib if attn is None else attn + contrib

    # --- residual + LayerNorm (f32) ------------------------------------------------
    r = h + attn + b_out
    mu = jnp.mean(r, axis=-1, keepdims=True)
    var = jnp.mean((r - mu) * (r - mu), axis=-1, keepdims=True)
    hn = (r - mu) * jax.lax.rsqrt(var + LN_EPS)
    hn = hn * gamma + beta

    # --- feed-forward + residual (bf16 MXU) -----------------------------------------
    f = jnp.dot(hn.astype(bf16), wbig_ref[:, 4 * H:5 * H], preferred_element_type=f32) + b1
    f = jnp.maximum(f, 0.0)
    f = jnp.dot(f.astype(bf16), wbig_ref[:, 5 * H:6 * H], preferred_element_type=f32) + b2

    o_ref[...] = (f + hn).astype(o_ref.dtype)


def pack_params(params):
    """Fold softmax scale into Wq/bq, pack weights into 2 bf16 slabs + 1 f32 bias slab."""
    scale = 1.0 / (HEAD_DIM ** 0.5)
    win_t = params["win_t"].at[:, :HIDDEN].multiply(scale)      # fold 1/sqrt(hd) into W_q
    bin_q = params["bin"].at[:, :HIDDEN].multiply(scale)        # ... and into b_q
    wfc_bf = params["wfc_t"].astype(jnp.bfloat16)                                        # (18, 128)
    wbig_bf = jnp.concatenate([win_t, params["wout_t"], params["w1_t"], params["w2_t"]],
                              axis=1).astype(jnp.bfloat16)                               # (128, 768)
    bbig = jnp.concatenate([params["bfc"], bin_q, params["bout"], params["gamma"],
                            params["beta"], params["b1"], params["b2"]],
                           axis=1).astype(jnp.float32)                                   # (1, 1152)
    return wfc_bf, wbig_bf, bbig


def _pick_tb(B, S):
    try:
        kind = jax.devices()[0].device_kind.lower()
    except Exception:
        kind = ""
    if "v5 lite" in kind or "v5e" in kind:
        target_rows = 512        # v5e: 128-wide MXU, single vector-store slot -> lighter slabs
    else:
        target_rows = 1024       # v6e / v7x: 256-wide MXU; deep M amortizes ~0.35us per grid step
    tb = max(1, min(target_rows // max(S, 1), B))
    if "7" in kind and B >= 2:   # v7x: 2 TensorCores -> keep >= 2 "parallel" grid steps
        tb = min(tb, -(-B // 2))
    return tb


def simple_set_encoder(x, params, tb=None):
    B, S, Din = x.shape
    assert Din == INPUT_DIM

    wfc_bf, wbig_bf, bbig = pack_params(params)

    if tb is None:
        tb = _pick_tb(B, S)
    if (tb * S) % 8 != 0:
        tb = B                   # fall back to a single full-array block (always layout-legal)

    Bp = ((B + tb - 1) // tb) * tb
    m = tb * S

    # 2-D slab: contiguous (m, Din) row blocks per grid step; padded (zero) sets are
    # computed (block-diagonal attention keeps them from touching real sets) then dropped.
    xr = x.reshape(B * S, Din)
    if Bp != B:
        xr = jnp.pad(xr, ((0, (Bp - B) * S), (0, 0)))

    out = pl.pallas_call(
        partial(_set_encoder_kernel, set_len=S),
        out_shape=jax.ShapeDtypeStruct((Bp * S, HIDDEN), jnp.float32),
        grid=(Bp // tb,),
        in_specs=[
            pl.BlockSpec((m, Din), lambda i: (i, 0)),
            # Grid-invariant operands (constant index_map -> fetched once, stay resident).
            pl.BlockSpec((INPUT_DIM, HIDDEN), lambda i: (0, 0)),
            pl.BlockSpec((HIDDEN, 6 * HIDDEN), lambda i: (0, 0)),
            pl.BlockSpec((1, 9 * HIDDEN), lambda i: (0, 0)),
        ],
        out_specs=pl.BlockSpec((m, HIDDEN), lambda i: (i, 0)),
        compiler_params=pltpu.CompilerParams(
            dimension_semantics=("parallel",),
            vmem_limit_bytes=32 * 1024 * 1024,   # explicit; safe on v5e/v6e/v7x
        ),
    )(xr, wfc_bf, wbig_bf, bbig)

    out = out[:B * S].reshape(B, S, HIDDEN)
    return out


def reference_forward_f32(x, p):
    """Pure-JAX f32 reference mirroring the PyTorch SimpleSetEncoder semantics exactly."""
    h = x @ p["wfc_t"] + p["bfc"][0]
    qkv = h @ p["win_t"] + p["bin"][0]
    q, k, v = jnp.split(qkv, 3, axis=-1)
    B, S, _ = q.shape

    def split_heads(t):
        return t.reshape(B, S, NUM_HEADS, HEAD_DIM).transpose(0, 2, 1, 3)

    qh, kh, vh = split_heads(q), split_heads(k), split_heads(v)
    s = jnp.einsum("bhqd,bhkd->bhqk", qh, kh) / jnp.sqrt(jnp.float32(HEAD_DIM))
    pr = jax.nn.softmax(s, axis=-1)
    a = jnp.einsum("bhqk,bhkd->bhqd", pr, vh).transpose(0, 2, 1, 3).reshape(B, S, HIDDEN)
    a = a @ p["wout_t"] + p["bout"][0]

    r = h + a
    mu = jnp.mean(r, axis=-1, keepdims=True)
    var = jnp.mean((r - mu) ** 2, axis=-1, keepdims=True)
    hn = (r - mu) / jnp.sqrt(var + LN_EPS) * p["gamma"][0] + p["beta"][0]

    f = jnp.maximum(hn @ p["w1_t"] + p["b1"][0], 0.0) @ p["w2_t"] + p["b2"][0]
    return f + hn


def reference_forward_packed(x, wfc_bf, wbig_bf, bias):
    """Pure-JAX reference with the SAME bf16-matmul / f32-accumulate recipe as the kernel."""
    H = HIDDEN
    f32, bf16 = jnp.float32, jnp.bfloat16
    bfc, b_in = bias[0, 0:H], bias[0, H:4 * H]
    b_out, gamma, beta = bias[0, 4 * H:5 * H], bias[0, 5 * H:6 * H], bias[0, 6 * H:7 * H]
    b1, b2 = bias[0, 7 * H:8 * H], bias[0, 8 * H:9 * H]
    w_in, w_out = wbig_bf[:, 0:3 * H], wbig_bf[:, 3 * H:4 * H]
    w1, w2 = wbig_bf[:, 4 * H:5 * H], wbig_bf[:, 5 * H:6 * H]

    h = jnp.dot(x.astype(bf16), wfc_bf, preferred_element_type=f32) + bfc
    qkv = jnp.dot(h.astype(bf16), w_in, preferred_element_type=f32) + b_in
    q, k, v = jnp.split(qkv, 3, axis=-1)
    B, S, _ = q.shape

    def split_heads(t):
        return t.reshape(B, S, NUM_HEADS, HEAD_DIM).transpose(0, 2, 1, 3)

    qh, kh, vh = split_heads(q), split_heads(k), split_heads(v)
    sc = jnp.einsum("bhqd,bhkd->bhqk", qh.astype(bf16), kh.astype(bf16),
                    preferred_element_type=f32)                 # scale already folded into W_q/b_q
    sc = sc - jnp.max(sc, axis=-1, keepdims=True)
    p = jnp.exp(sc)
    p = p / jnp.sum(p, axis=-1, keepdims=True)
    a = jnp.einsum("bhqk,bhkd->bhqd", p.astype(bf16), vh.astype(bf16),
                   preferred_element_type=f32)
    a = a.transpose(0, 2, 1, 3).reshape(B, S, H)
    a = jnp.dot(a.astype(bf16), w_out, preferred_element_type=f32) + b_out

    r = h + a
    mu = jnp.mean(r, axis=-1, keepdims=True)
    var = jnp.mean((r - mu) ** 2, axis=-1, keepdims=True)
    hn = (r - mu) * jax.lax.rsqrt(var + LN_EPS) * gamma + beta

    f = jnp.dot(hn.astype(bf16), w1, preferred_element_type=f32) + b1
    f = jnp.maximum(f, 0.0)
    f = jnp.dot(f.astype(bf16), w2, preferred_element_type=f32) + b2
    return f + hn


def make_params(key):
    ks = jax.random.split(key, 10)
    scale = 0.05
    f32 = jnp.float32
    return {
        "wfc_t": (scale * jax.random.normal(ks[0], (INPUT_DIM, HIDDEN))).astype(f32),
        "bfc": (scale * jax.random.normal(ks[1], (1, HIDDEN))).astype(f32),
        "win_t": (scale * jax.random.normal(ks[2], (HIDDEN, 3 * HIDDEN))).astype(f32),
        "bin": (scale * jax.random.normal(ks[3], (1, 3 * HIDDEN))).astype(f32),
        "wout_t": (scale * jax.random.normal(ks[4], (HIDDEN, HIDDEN))).astype(f32),
        "bout": (scale * jax.random.normal(ks[5], (1, HIDDEN))).astype(f32),
        "gamma": jnp.ones((1, HIDDEN), f32),
        "beta": jnp.zeros((1, HIDDEN), f32),
        "w1_t": (scale * jax.random.normal(ks[6], (HIDDEN, HIDDEN))).astype(f32),
        "b1": (scale * jax.random.normal(ks[7], (1, HIDDEN))).astype(f32),
        "w2_t": (scale * jax.random.normal(ks[8], (HIDDEN, HIDDEN))).astype(f32),
        "b2": (scale * jax.random.normal(ks[9], (1, HIDDEN))).astype(f32),
    }


def _check(out, x, params, label, tol_packed=1e-2, tol_f32=1.5e-1):
    wfc_bf, wbig_bf, bbig = pack_params(params)
    ref_bf = reference_forward_packed(x, wfc_bf, wbig_bf, bbig)   # same bf16 recipe as kernel
    ref32 = reference_forward_f32(x, params)                      # exact PyTorch-semantics f32
    err_bf = float(jnp.max(jnp.abs(out - ref_bf)))
    err32 = float(jnp.max(jnp.abs(out - ref32)))
    # tight check: kernel vs identically-quantized reference (approx-reciprocal + reassociation)
    assert err_bf < tol_packed, f"{label}: mismatch vs bf16 reference: {err_bf}"
    # loose sanity check: bf16 weight/activation rounding budget vs full-f32 semantics
    assert err32 < tol_f32, f"{label}: mismatch vs f32 reference: {err32}"


if __name__ == "__main__":
    key = jax.random.PRNGKey(0)
    pkey, xkey = jax.random.split(key)
    params = make_params(pkey)

    # Small shape implied by the module: one round set = [env] + N players + [fund]  (S = 8).
    B, S = 2, 8
    x = jax.random.normal(xkey, (B, S, INPUT_DIM), dtype=jnp.float32)
    out = jax.block_until_ready(simple_set_encoder(x, params))
    assert out.shape == (B, S, HIDDEN)
    _check(out, x, params, "small")

    # Larger batch: exercises the multi-set slab / block-diagonal attention path.
    B2 = 48
    x2 = jax.random.normal(jax.random.PRNGKey(1), (B2, S, INPUT_DIM), dtype=jnp.float32)
    out2 = jax.block_until_ready(simple_set_encoder(x2, params))
    assert out2.shape == (B2, S, HIDDEN)
    _check(out2, x2, params, "batched")

    # Explicit tb forcing a multi-step grid with batch padding (48 -> 60 sets, grid = 3).
    out3 = jax.block_until_ready(simple_set_encoder(x2, params, tb=20))
    assert out3.shape == (B2, S, HIDDEN)
    _check(out3, x2, params, "padded-grid")

    print("KERNEL_OK")
</pallas_src>

<mosaic_0001>
module attributes {stable_mosaic.version = 11 : i64} {
  func.func @_set_encoder_kernel(%arg0: i32, %arg1: memref<16x18xf32, #tpu.memory_space<vmem>>, %arg2: memref<18x128xbf16, #tpu.memory_space<vmem>>, %arg3: memref<128x768xbf16, #tpu.memory_space<vmem>>, %arg4: memref<1x1152xf32, #tpu.memory_space<vmem>>, %arg5: memref<16x128xf32, #tpu.memory_space<vmem>>) attributes {dimension_semantics = [#tpu.dimension_semantics<parallel>], iteration_bounds = array<i64: 1>, scalar_prefetch = 0 : i64, scratch_operands = 0 : i64, tpu.core_type = #tpu.core_type<tc>, window_params = [{transform_indices = @transform_0, window_bounds = array<i64: 16, 18>}, {pipeline_mode = #tpu.pipeline_mode<synchronous>, transform_indices = @transform_1, window_bounds = array<i64: 18, 128>}, {pipeline_mode = #tpu.pipeline_mode<synchronous>, transform_indices = @transform_2, window_bounds = array<i64: 128, 768>}, {pipeline_mode = #tpu.pipeline_mode<synchronous>, transform_indices = @transform_3, window_bounds = array<i64: 1, 1152>}, {transform_indices = @transform_4, window_bounds = array<i64: 16, 128>}]} {
    %c0 = arith.constant 0 : index
    %c0_0 = arith.constant 0 : index
    %0 = vector.load %arg4[%c0, %c0_0] : memref<1x1152xf32, #tpu.memory_space<vmem>>, vector<1x128xf32>
    %c0_1 = arith.constant 0 : index
    %c128 = arith.constant 128 : index
    %1 = vector.load %arg4[%c0_1, %c128] : memref<1x1152xf32, #tpu.memory_space<vmem>>, vector<1x384xf32>
    %c0_2 = arith.constant 0 : index
    %c512 = arith.constant 512 : index
    %2 = vector.load %arg4[%c0_2, %c512] : memref<1x1152xf32, #tpu.memory_space<vmem>>, vector<1x128xf32>
    %c0_3 = arith.constant 0 : index
    %c640 = arith.constant 640 : index
    %3 = vector.load %arg4[%c0_3, %c640] : memref<1x1152xf32, #tpu.memory_space<vmem>>, vector<1x128xf32>
    %c0_4 = arith.constant 0 : index
    %c768 = arith.constant 768 : index
    %4 = vector.load %arg4[%c0_4, %c768] : memref<1x1152xf32, #tpu.memory_space<vmem>>, vector<1x128xf32>
    %c0_5 = arith.constant 0 : index
    %c896 = arith.constant 896 : index
    %5 = vector.load %arg4[%c0_5, %c896] : memref<1x1152xf32, #tpu.memory_space<vmem>>, vector<1x128xf32>
    %c0_6 = arith.constant 0 : index
    %c1024 = arith.constant 1024 : index
    %6 = vector.load %arg4[%c0_6, %c1024] : memref<1x1152xf32, #tpu.memory_space<vmem>>, vector<1x128xf32>
    %c0_7 = arith.constant 0 : index
    %c0_8 = arith.constant 0 : index
    %7 = vector.load %arg1[%c0_7, %c0_8] : memref<16x18xf32, #tpu.memory_space<vmem>>, vector<16x18xf32>
    %8 = arith.truncf %7 : vector<16x18xf32> to vector<16x18xbf16>
    %c0_9 = arith.constant 0 : index
    %c0_10 = arith.constant 0 : index
    %9 = vector.load %arg2[%c0_9, %c0_10] : memref<18x128xbf16, #tpu.memory_space<vmem>>, vector<18x128xbf16>
    %cst = arith.constant dense<0.000000e+00> : vector<16x128xf32>
    %10 = tpu.matmul %8, %9, %cst {dimension_numbers = #tpu.dot_dimension_numbers<[1], [0], [0], [1], [0, 0, 1, 1], [], []>} : vector<16x18xbf16>, vector<18x128xbf16>, vector<16x128xf32> -> vector<16x128xf32>
    %11 = vector.broadcast %0 : vector<1x128xf32> to vector<16x128xf32>
    %12 = arith.addf %10, %11 : vector<16x128xf32>
    %13 = arith.truncf %12 : vector<16x128xf32> to vector<16x128xbf16>
    %c0_11 = arith.constant 0 : index
    %c0_12 = arith.constant 0 : index
    %14 = vector.load %arg3[%c0_11, %c0_12] : memref<128x768xbf16, #tpu.memory_space<vmem>>, vector<128x384xbf16>
    %cst_13 = arith.constant dense<0.000000e+00> : vector<16x384xf32>
    %15 = tpu.matmul %13, %14, %cst_13 {dimension_numbers = #tpu.dot_dimension_numbers<[1], [0], [0], [1], [0, 0, 1, 1], [], []>} : vector<16x128xbf16>, vector<128x384xbf16>, vector<16x384xf32> -> vector<16x384xf32>
    %16 = vector.broadcast %1 : vector<1x384xf32> to vector<16x384xf32>
    %17 = arith.addf %15, %16 : vector<16x384xf32>
    %18 = vector.extract_strided_slice %17 {offsets = [0, 0], sizes = [16, 32], strides = [1, 1]} : vector<16x384xf32> to vector<16x32xf32>
    %19 = vector.shape_cast %18 : vector<16x32xf32> to vector<2x8x32xf32>
    %20 = arith.truncf %19 : vector<2x8x32xf32> to vector<2x8x32xbf16>
    %21 = vector.extract_strided_slice %17 {offsets = [0, 128], sizes = [16, 32], strides = [1, 1]} : vector<16x384xf32> to vector<16x32xf32>
    %22 = vector.shape_cast %21 : vector<16x32xf32> to vector<2x8x32xf32>
    %23 = arith.truncf %22 : vector<2x8x32xf32> to vector<2x8x32xbf16>
    %24 = vector.extract_strided_slice %17 {offsets = [0, 256], sizes = [16, 32], strides = [1, 1]} : vector<16x384xf32> to vector<16x32xf32>
    %25 = vector.shape_cast %24 : vector<16x32xf32> to vector<2x8x32xf32>
    %26 = arith.truncf %25 : vector<2x8x32xf32> to vector<2x8x32xbf16>
    %cst_14 = arith.constant dense<0.000000e+00> : vector<2x8x8xf32>
    %27 = tpu.matmul %20, %23, %cst_14 {dimension_numbers = #tpu.dot_dimension_numbers<[2], [2], [1], [1], [0, 0, 0, 1, 1, 1], [0], [0]>} : vector<2x8x32xbf16>, vector<2x8x32xbf16>, vector<2x8x8xf32> -> vector<2x8x8xf32>
    %cst_15 = arith.constant dense<0xFF800000> : vector<2x8xf32>
    %28 = vector.multi_reduction <maximumf>, %27, %cst_15 [2] : vector<2x8x8xf32> to vector<2x8xf32>
    %29 = vector.shape_cast %28 : vector<2x8xf32> to vector<2x8x1xf32>
    %30 = vector.broadcast %29 : vector<2x8x1xf32> to vector<2x8x8xf32>
    %31 = arith.subf %27, %30 : vector<2x8x8xf32>
    %32 = math.exp %31 : vector<2x8x8xf32>
    %cst_16 = arith.constant dense<0.000000e+00> : vector<2x8xf32>
    %33 = vector.multi_reduction <add>, %32, %cst_16 [2] : vector<2x8x8xf32> to vector<2x8xf32>
    %34 = vector.shape_cast %33 : vector<2x8xf32> to vector<2x8x1xf32>
    %35 = tpu.reciprocal %34 {approx = true} : vector<2x8x1xf32> -> vector<2x8x1xf32>
    %36 = vector.broadcast %35 : vector<2x8x1xf32> to vector<2x8x8xf32>
    %37 = arith.mulf %32, %36 : vector<2x8x8xf32>
    %38 = arith.truncf %37 : vector<2x8x8xf32> to vector<2x8x8xbf16>
    %cst_17 = arith.constant dense<0.000000e+00> : vector<2x8x32xf32>
    %39 = tpu.matmul %38, %26, %cst_17 {dimension_numbers = #tpu.dot_dimension_numbers<[2], [1], [1], [2], [0, 0, 0, 1, 1, 2], [0], [0]>} : vector<2x8x8xbf16>, vector<2x8x32xbf16>, vector<2x8x32xf32> -> vector<2x8x32xf32>
    %40 = vector.shape_cast %39 : vector<2x8x32xf32> to vector<16x32xf32>
    %41 = arith.truncf %40 : vector<16x32xf32> to vector<16x32xbf16>
    %c0_18 = arith.constant 0 : index
    %c384 = arith.constant 384 : index
    %42 = vector.load %arg3[%c0_18, %c384] : memref<128x768xbf16, #tpu.memory_space<vmem>>, vector<32x128xbf16>
    %cst_19 = arith.constant dense<0.000000e+00> : vector<16x128xf32>
    %43 = tpu.matmul %41, %42, %cst_19 {dimension_numbers = #tpu.dot_dimension_numbers<[1], [0], [0], [1], [0, 0, 1, 1], [], []>} : vector<16x32xbf16>, vector<32x128xbf16>, vector<16x128xf32> -> vector<16x128xf32>
    %44 = vector.extract_strided_slice %17 {offsets = [0, 32], sizes = [16, 32], strides = [1, 1]} : vector<16x384xf32> to vector<16x32xf32>
    %45 = vector.shape_cast %44 : vector<16x32xf32> to vector<2x8x32xf32>
    %46 = arith.truncf %45 : vector<2x8x32xf32> to vector<2x8x32xbf16>
    %47 = vector.extract_strided_slice %17 {offsets = [0, 160], sizes = [16, 32], strides = [1, 1]} : vector<16x384xf32> to vector<16x32xf32>
    %48 = vector.shape_cast %47 : vector<16x32xf32> to vector<2x8x32xf32>
    %49 = arith.truncf %48 : vector<2x8x32xf32> to vector<2x8x32xbf16>
    %50 = vector.extract_strided_slice %17 {offsets = [0, 288], sizes = [16, 32], strides = [1, 1]} : vector<16x384xf32> to vector<16x32xf32>
    %51 = vector.shape_cast %50 : vector<16x32xf32> to vector<2x8x32xf32>
    %52 = arith.truncf %51 : vector<2x8x32xf32> to vector<2x8x32xbf16>
    %cst_20 = arith.constant dense<0.000000e+00> : vector<2x8x8xf32>
    %53 = tpu.matmul %46, %49, %cst_20 {dimension_numbers = #tpu.dot_dimension_numbers<[2], [2], [1], [1], [0, 0, 0, 1, 1, 1], [0], [0]>} : vector<2x8x32xbf16>, vector<2x8x32xbf16>, vector<2x8x8xf32> -> vector<2x8x8xf32>
    %cst_21 = arith.constant dense<0xFF800000> : vector<2x8xf32>
    %54 = vector.multi_reduction <maximumf>, %53, %cst_21 [2] : vector<2x8x8xf32> to vector<2x8xf32>
    %55 = vector.shape_cast %54 : vector<2x8xf32> to vector<2x8x1xf32>
    %56 = vector.broadcast %55 : vector<2x8x1xf32> to vector<2x8x8xf32>
    %57 = arith.subf %53, %56 : vector<2x8x8xf32>
    %58 = math.exp %57 : vector<2x8x8xf32>
    %cst_22 = arith.constant dense<0.000000e+00> : vector<2x8xf32>
    %59 = vector.multi_reduction <add>, %58, %cst_22 [2] : vector<2x8x8xf32> to vector<2x8xf32>
    %60 = vector.shape_cast %59 : vector<2x8xf32> to vector<2x8x1xf32>
    %61 = tpu.reciprocal %60 {approx = true} : vector<2x8x1xf32> -> vector<2x8x1xf32>
    %62 = vector.broadcast %61 : vector<2x8x1xf32> to vector<2x8x8xf32>
    %63 = arith.mulf %58, %62 : vector<2x8x8xf32>
    %64 = arith.truncf %63 : vector<2x8x8xf32> to vector<2x8x8xbf16>
    %cst_23 = arith.constant dense<0.000000e+00> : vector<2x8x32xf32>
    %65 = tpu.matmul %64, %52, %cst_23 {dimension_numbers = #tpu.dot_dimension_numbers<[2], [1], [1], [2], [0, 0, 0, 1, 1, 2], [0], [0]>} : vector<2x8x8xbf16>, vector<2x8x32xbf16>, vector<2x8x32xf32> -> vector<2x8x32xf32>
    %66 = vector.shape_cast %65 : vector<2x8x32xf32> to vector<16x32xf32>
    %67 = arith.truncf %66 : vector<16x32xf32> to vector<16x32xbf16>
    %c32 = arith.constant 32 : index
    %c384_24 = arith.constant 384 : index
    %68 = vector.load %arg3[%c32, %c384_24] : memref<128x768xbf16, #tpu.memory_space<vmem>>, vector<32x128xbf16>
    %cst_25 = arith.constant dense<0.000000e+00> : vector<16x128xf32>
    %69 = tpu.matmul %67, %68, %cst_25 {dimension_numbers = #tpu.dot_dimension_numbers<[1], [0], [0], [1], [0, 0, 1, 1], [], []>} : vector<16x32xbf16>, vector<32x128xbf16>, vector<16x128xf32> -> vector<16x128xf32>
    %70 = arith.addf %43, %69 : vector<16x128xf32>
    %71 = vector.extract_strided_slice %17 {offsets = [0, 64], sizes = [16, 32], strides = [1, 1]} : vector<16x384xf32> to vector<16x32xf32>
    %72 = vector.shape_cast %71 : vector<16x32xf32> to vector<2x8x32xf32>
    %73 = arith.truncf %72 : vector<2x8x32xf32> to vector<2x8x32xbf16>
    %74 = vector.extract_strided_slice %17 {offsets = [0, 192], sizes = [16, 32], strides = [1, 1]} : vector<16x384xf32> to vector<16x32xf32>
    %75 = vector.shape_cast %74 : vector<16x32xf32> to vector<2x8x32xf32>
    %76 = arith.truncf %75 : vector<2x8x32xf32> to vector<2x8x32xbf16>
    %77 = vector.extract_strided_slice %17 {offsets = [0, 320], sizes = [16, 32], strides = [1, 1]} : vector<16x384xf32> to vector<16x32xf32>
    %78 = vector.shape_cast %77 : vector<16x32xf32> to vector<2x8x32xf32>
    %79 = arith.truncf %78 : vector<2x8x32xf32> to vector<2x8x32xbf16>
    %cst_26 = arith.constant dense<0.000000e+00> : vector<2x8x8xf32>
    %80 = tpu.matmul %73, %76, %cst_26 {dimension_numbers = #tpu.dot_dimension_numbers<[2], [2], [1], [1], [0, 0, 0, 1, 1, 1], [0], [0]>} : vector<2x8x32xbf16>, vector<2x8x32xbf16>, vector<2x8x8xf32> -> vector<2x8x8xf32>
    %cst_27 = arith.constant dense<0xFF800000> : vector<2x8xf32>
    %81 = vector.multi_reduction <maximumf>, %80, %cst_27 [2] : vector<2x8x8xf32> to vector<2x8xf32>
    %82 = vector.shape_cast %81 : vector<2x8xf32> to vector<2x8x1xf32>
    %83 = vector.broadcast %82 : vector<2x8x1xf32> to vector<2x8x8xf32>
    %84 = arith.subf %80, %83 : vector<2x8x8xf32>
    %85 = math.exp %84 : vector<2x8x8xf32>
    %cst_28 = arith.constant dense<0.000000e+00> : vector<2x8xf32>
    %86 = vector.multi_reduction <add>, %85, %cst_28 [2] : vector<2x8x8xf32> to vector<2x8xf32>
    %87 = vector.shape_cast %86 : vector<2x8xf32> to vector<2x8x1xf32>
    %88 = tpu.reciprocal %87 {approx = true} : vector<2x8x1xf32> -> vector<2x8x1xf32>
    %89 = vector.broadcast %88 : vector<2x8x1xf32> to vector<2x8x8xf32>
    %90 = arith.mulf %85, %89 : vector<2x8x8xf32>
    %91 = arith.truncf %90 : vector<2x8x8xf32> to vector<2x8x8xbf16>
    %cst_29 = arith.constant dense<0.000000e+00> : vector<2x8x32xf32>
    %92 = tpu.matmul %91, %79, %cst_29 {dimension_numbers = #tpu.dot_dimension_numbers<[2], [1], [1], [2], [0, 0, 0, 1, 1, 2], [0], [0]>} : vector<2x8x8xbf16>, vector<2x8x32xbf16>, vector<2x8x32xf32> -> vector<2x8x32xf32>
    %93 = vector.shape_cast %92 : vector<2x8x32xf32> to vector<16x32xf32>
    %94 = arith.truncf %93 : vector<16x32xf32> to vector<16x32xbf16>
    %c64 = arith.constant 64 : index
    %c384_30 = arith.constant 384 : index
    %95 = vector.load %arg3[%c64, %c384_30] : memref<128x768xbf16, #tpu.memory_space<vmem>>, vector<32x128xbf16>
    %cst_31 = arith.constant dense<0.000000e+00> : vector<16x128xf32>
    %96 = tpu.matmul %94, %95, %cst_31 {dimension_numbers = #tpu.dot_dimension_numbers<[1], [0], [0], [1], [0, 0, 1, 1], [], []>} : vector<16x32xbf16>, vector<32x128xbf16>, vector<16x128xf32> -> vector<16x128xf32>
    %97 = arith.addf %70, %96 : vector<16x128xf32>
    %98 = vector.extract_strided_slice %17 {offsets = [0, 96], sizes = [16, 32], strides = [1, 1]} : vector<16x384xf32> to vector<16x32xf32>
    %99 = vector.shape_cast %98 : vector<16x32xf32> to vector<2x8x32xf32>
    %100 = arith.truncf %99 : vector<2x8x32xf32> to vector<2x8x32xbf16>
    %101 = vector.extract_strided_slice %17 {offsets = [0, 224], sizes = [16, 32], strides = [1, 1]} : vector<16x384xf32> to vector<16x32xf32>
    %102 = vector.shape_cast %101 : vector<16x32xf32> to vector<2x8x32xf32>
    %103 = arith.truncf %102 : vector<2x8x32xf32> to vector<2x8x32xbf16>
    %104 = vector.extract_strided_slice %17 {offsets = [0, 352], sizes = [16, 32], strides = [1, 1]} : vector<16x384xf32> to vector<16x32xf32>
    %105 = vector.shape_cast %104 : vector<16x32xf32> to vector<2x8x32xf32>
    %106 = arith.truncf %105 : vector<2x8x32xf32> to vector<2x8x32xbf16>
    %cst_32 = arith.constant dense<0.000000e+00> : vector<2x8x8xf32>
    %107 = tpu.matmul %100, %103, %cst_32 {dimension_numbers = #tpu.dot_dimension_numbers<[2], [2], [1], [1], [0, 0, 0, 1, 1, 1], [0], [0]>} : vector<2x8x32xbf16>, vector<2x8x32xbf16>, vector<2x8x8xf32> -> vector<2x8x8xf32>
    %cst_33 = arith.constant dense<0xFF800000> : vector<2x8xf32>
    %108 = vector.multi_reduction <maximumf>, %107, %cst_33 [2] : vector<2x8x8xf32> to vector<2x8xf32>
    %109 = vector.shape_cast %108 : vector<2x8xf32> to vector<2x8x1xf32>
    %110 = vector.broadcast %109 : vector<2x8x1xf32> to vector<2x8x8xf32>
    %111 = arith.subf %107, %110 : vector<2x8x8xf32>
    %112 = math.exp %111 : vector<2x8x8xf32>
    %cst_34 = arith.constant dense<0.000000e+00> : vector<2x8xf32>
    %113 = vector.multi_reduction <add>, %112, %cst_34 [2] : vector<2x8x8xf32> to vector<2x8xf32>
    %114 = vector.shape_cast %113 : vector<2x8xf32> to vector<2x8x1xf32>
    %115 = tpu.reciprocal %114 {approx = true} : vector<2x8x1xf32> -> vector<2x8x1xf32>
    %116 = vector.broadcast %115 : vector<2x8x1xf32> to vector<2x8x8xf32>
    %117 = arith.mulf %112, %116 : vector<2x8x8xf32>
    %118 = arith.truncf %117 : vector<2x8x8xf32> to vector<2x8x8xbf16>
    %cst_35 = arith.constant dense<0.000000e+00> : vector<2x8x32xf32>
    %119 = tpu.matmul %118, %106, %cst_35 {dimension_numbers = #tpu.dot_dimension_numbers<[2], [1], [1], [2], [0, 0, 0, 1, 1, 2], [0], [0]>} : vector<2x8x8xbf16>, vector<2x8x32xbf16>, vector<2x8x32xf32> -> vector<2x8x32xf32>
    %120 = vector.shape_cast %119 : vector<2x8x32xf32> to vector<16x32xf32>
    %121 = arith.truncf %120 : vector<16x32xf32> to vector<16x32xbf16>
    %c96 = arith.constant 96 : index
    %c384_36 = arith.constant 384 : index
    %122 = vector.load %arg3[%c96, %c384_36] : memref<128x768xbf16, #tpu.memory_space<vmem>>, vector<32x128xbf16>
    %cst_37 = arith.constant dense<0.000000e+00> : vector<16x128xf32>
    %123 = tpu.matmul %121, %122, %cst_37 {dimension_numbers = #tpu.dot_dimension_numbers<[1], [0], [0], [1], [0, 0, 1, 1], [], []>} : vector<16x32xbf16>, vector<32x128xbf16>, vector<16x128xf32> -> vector<16x128xf32>
    %124 = arith.addf %97, %123 : vector<16x128xf32>
    %125 = arith.addf %12, %124 : vector<16x128xf32>
    %126 = vector.broadcast %2 : vector<1x128xf32> to vector<16x128xf32>
    %127 = arith.addf %125, %126 : vector<16x128xf32>
    %cst_38 = arith.constant dense<0.000000e+00> : vector<16xf32>
    %128 = vector.multi_reduction <add>, %127, %cst_38 [1] : vector<16x128xf32> to vector<16xf32>
    %129 = vector.shape_cast %128 : vector<16xf32> to vector<16x1xf32>
    %cst_39 = arith.constant 1.280000e+02 : f32
    %130 = vector.broadcast %cst_39 : f32 to vector<16x1xf32>
    %131 = arith.divf %129, %130 : vector<16x1xf32>
    %132 = vector.broadcast %131 : vector<16x1xf32> to vector<16x128xf32>
    %133 = arith.subf %127, %132 : vector<16x128xf32>
    %134 = vector.broadcast %131 : vector<16x1xf32> to vector<16x128xf32>
    %135 = arith.subf %127, %134 : vector<16x128xf32>
    %136 = arith.mulf %133, %135 : vector<16x128xf32>
    %cst_40 = arith.constant dense<0.000000e+00> : vector<16xf32>
    %137 = vector.multi_reduction <add>, %136, %cst_40 [1] : vector<16x128xf32> to vector<16xf32>
    %138 = vector.shape_cast %137 : vector<16xf32> to vector<16x1xf32>
    %cst_41 = arith.constant 1.280000e+02 : f32
    %139 = vector.broadcast %cst_41 : f32 to vector<16x1xf32>
    %140 = arith.divf %138, %139 : vector<16x1xf32>
    %141 = vector.broadcast %131 : vector<16x1xf32> to vector<16x128xf32>
    %142 = arith.subf %127, %141 : vector<16x128xf32>
    %cst_42 = arith.constant 9.99999974E-6 : f32
    %143 = vector.broadcast %cst_42 : f32 to vector<16x1xf32>
    %144 = arith.addf %140, %143 : vector<16x1xf32>
    %145 = math.rsqrt %144 : vector<16x1xf32>
    %146 = vector.broadcast %145 : vector<16x1xf32> to vector<16x128xf32>
    %147 = arith.mulf %142, %146 : vector<16x128xf32>
    %148 = vector.broadcast %3 : vector<1x128xf32> to vector<16x128xf32>
    %149 = arith.mulf %147, %148 : vector<16x128xf32>
    %150 = vector.broadcast %4 : vector<1x128xf32> to vector<16x128xf32>
    %151 = arith.addf %149, %150 : vector<16x128xf32>
    %152 = arith.truncf %151 : vector<16x128xf32> to vector<16x128xbf16>
    %c0_43 = arith.constant 0 : index
    %c512_44 = arith.constant 512 : index
    %153 = vector.load %arg3[%c0_43, %c512_44] : memref<128x768xbf16, #tpu.memory_space<vmem>>, vector<128x128xbf16>
    %cst_45 = arith.constant dense<0.000000e+00> : vector<16x128xf32>
    %154 = tpu.matmul %152, %153, %cst_45 {dimension_numbers = #tpu.dot_dimension_numbers<[1], [0], [0], [1], [0, 0, 1, 1], [], []>} : vector<16x128xbf16>, vector<128x128xbf16>, vector<16x128xf32> -> vector<16x128xf32>
    %155 = vector.broadcast %5 : vector<1x128xf32> to vector<16x128xf32>
    %156 = arith.addf %154, %155 : vector<16x128xf32>
    %cst_46 = arith.constant 0.000000e+00 : f32
    %157 = vector.broadcast %cst_46 : f32 to vector<16x128xf32>
    %158 = arith.maximumf %156, %157 : vector<16x128xf32>
    %159 = arith.truncf %158 : vector<16x128xf32> to vector<16x128xbf16>
    %c0_47 = arith.constant 0 : index
    %c640_48 = arith.constant 640 : index
    %160 = vector.load %arg3[%c0_47, %c640_48] : memref<128x768xbf16, #tpu.memory_space<vmem>>, vector<128x128xbf16>
    %cst_49 = arith.constant dense<0.000000e+00> : vector<16x128xf32>
    %161 = tpu.matmul %159, %160, %cst_49 {dimension_numbers = #tpu.dot_dimension_numbers<[1], [0], [0], [1], [0, 0, 1, 1], [], []>} : vector<16x128xbf16>, vector<128x128xbf16>, vector<16x128xf32> -> vector<16x128xf32>
    %162 = vector.broadcast %6 : vector<1x128xf32> to vector<16x128xf32>
    %163 = arith.addf %161, %162 : vector<16x128xf32>
    %164 = arith.addf %163, %151 : vector<16x128xf32>
    %c0_50 = arith.constant 0 : index
    %c0_51 = arith.constant 0 : index
    %165 = vector.load %arg5[%c0_50, %c0_51] : memref<16x128xf32, #tpu.memory_space<vmem>>, vector<16x128xf32>
    tpu.vector_store %arg5[%c0_50, %c0_51], %164 {strides = array<i32>} : memref<16x128xf32, #tpu.memory_space<vmem>>, vector<16x128xf32>,
    return
  }
  func.func @transform_0(%arg0: i32) -> (i32, i32) {
    %c0_i32 = arith.constant 0 : i32
    %c0_i32_0 = arith.constant 0 : i32
    return %arg0, %c0_i32 : i32, i32
  }
  func.func @transform_1(%arg0: i32) -> (i32, i32) {
    %c0_i32 = arith.constant 0 : i32
    %c0_i32_0 = arith.constant 0 : i32
    %c0_i32_1 = arith.constant 0 : i32
    return %c0_i32, %c0_i32_0 : i32, i32
  }
  func.func @transform_2(%arg0: i32) -> (i32, i32) {
    %c0_i32 = arith.constant 0 : i32
    %c0_i32_0 = arith.constant 0 : i32
    %c0_i32_1 = arith.constant 0 : i32
    return %c0_i32, %c0_i32_0 : i32, i32
  }
  func.func @transform_3(%arg0: i32) -> (i32, i32) {
    %c0_i32 = arith.constant 0 : i32
    %c0_i32_0 = arith.constant 0 : i32
    %c0_i32_1 = arith.constant 0 : i32
    return %c0_i32, %c0_i32_0 : i32, i32
  }
  func.func @transform_4(%arg0: i32) -> (i32, i32) {
    %c0_i32 = arith.constant 0 : i32
    %c0_i32_0 = arith.constant 0 : i32
    return %arg0, %c0_i32 : i32, i32
  }
}

</mosaic_0001>

<llo_original>
// kernel: tpu_custom_call.1
$region0: #{tpu_custom_call.1}
  #allocation0 [shape = 'u32[]', space=smem, size = 0x4, offset = 0x4, fixed_abs, tag = 'smem constant byte address 0x4 - core index']
  #allocation1 [shape = 'u32[72,128]{1,0:T(1,128)}', space=vmem, size = 0x9000, scoped, tag = 'internal scratch']
  %s0 = inlined_call_operand.hbm [shape: f32[16,18], index: 0, kind: input, shape index: {}]
  %s1 = inlined_call_operand.hbm [shape: bf16[18,128], index: 1, kind: input, shape index: {}]
  %s2 = inlined_call_operand.hbm [shape: bf16[128,768], index: 2, kind: input, shape index: {}]
  %s3 = inlined_call_operand.hbm [shape: f32[1,1152], index: 3, kind: input, shape index: {}]
  %s4 = inlined_call_operand.hbm [shape: f32[16,128], index: 4, kind: output, shape index: {}]
  %s5 = sld [smem:[#allocation0]]
  $region42: #{tpu_custom_call.1} parent=0
    _
  %s7 = ssub.s32 1, %s5
  %s8 = scalar_select 0, %s7, %s5
  $region1: #{tpu_custom_call.1} parent=0
    #allocation2 [shape = 'u8[8192]{0}', space=vmem, size = 0x2000, scoped, tag = 'input window, operand 0, single buffered']
    #allocation3 [shape = 's32[1]{0}', space=sflag, size = 0x4, scoped, tag = 'scoped memory for tpu_custom_call.1']
    #allocation4 [shape = 's32[1]{0}', space=sflag, size = 0x4, scoped, tag = 'scoped memory for tpu_custom_call.1']
    #allocation5 [shape = 'u8[6144]{0}', space=vmem, size = 0x1800, scoped, tag = 'input window, operand 1, single buffered']
    #allocation6 [shape = 's32[1]{0}', space=sflag, size = 0x4, scoped, tag = 'scoped memory for tpu_custom_call.1']
    #allocation7 [shape = 'u8[196608]{0}', space=vmem, size = 0x30000, scoped, tag = 'input window, operand 2, single buffered']
    #allocation8 [shape = 'u8[4608]{0}', space=vmem, size = 0x1400, scoped, tag = 'input window, operand 3, single buffered']
    #allocation9 [shape = 's32[1]{0}', space=sflag, size = 0x4, scoped, tag = 'scoped memory for tpu_custom_call.1']
    #allocation10 [shape = 'u8[8192]{0}', space=vmem, size = 0x2000, scoped, tag = 'output window, operand 0, single buffered']
    %9 = vsyncpa [#allocation3], 0
    %10 = vsyncpa [#allocation6], 0
    %11 = vsyncpa [#allocation9], 0
    %12 = vsyncpa [#allocation4], 0
    // Predicated region
    $region2: #{tpu_custom_call.1} parent=1 // pred_check
      _
    $region3: #{tpu_custom_call.1} parent=1 // pred_check_branch
      %14 = sbr.rel (0) target = $region5
    $region4: #{tpu_custom_call.1} parent=1 // pred_region
      %16 = vsyncadd [#allocation3], 0
      %s17 = sshll.u32 %s0, 4
      %s18 = int_to_ptr.hbm [resolvable:$true] %s17
      %s19 = sshll.u32 [#allocation2], 4
      %s20 = int_to_ptr.vmem [resolvable:$true] %s19
      %25 = dma.hbm_to_vmem [thread:$0]  %s18, 256, %s20, [#allocation3], 128, 128, 8
    $region5: #{tpu_custom_call.1} parent=1 // pred_fallthru
      _
    // Predicated region
    $region6: #{tpu_custom_call.1} parent=1 // pred_check
      _
    $region7: #{tpu_custom_call.1} parent=1 // pred_check_branch
      %27 = sbr.rel (0) target = $region9
    $region8: #{tpu_custom_call.1} parent=1 // pred_region
      %29 = vsyncadd [#allocation6], 0
      %s30 = sshll.u32 %s1, 4
      %s31 = int_to_ptr.hbm [resolvable:$true] %s30
      %s32 = sshll.u32 [#allocation5], 4
      %s33 = int_to_ptr.vmem [resolvable:$true] %s32
      %38 = dma.hbm_to_vmem [thread:$0]  %s31, 192, %s33, [#allocation6], 64, 64, 4
    $region9: #{tpu_custom_call.1} parent=1 // pred_fallthru
      _
    // Predicated region
    $region10: #{tpu_custom_call.1} parent=1 // pred_check
      _
    $region11: #{tpu_custom_call.1} parent=1 // pred_check_branch
      %40 = sbr.rel (0) target = $region13
    $region12: #{tpu_custom_call.1} parent=1 // pred_region
      %42 = vsyncadd [#allocation6], 0
      %s43 = sshll.u32 %s2, 4
      %s44 = int_to_ptr.hbm [resolvable:$true] %s43
      %s45 = sshll.u32 [#allocation7], 4
      %s46 = int_to_ptr.vmem [resolvable:$true] %s45
      %51 = dma.hbm_to_vmem [thread:$0]  %s44, 6144, %s46, [#allocation6], 384, 384, 24
    $region13: #{tpu_custom_call.1} parent=1 // pred_fallthru
      _
    // Predicated region
    $region14: #{tpu_custom_call.1} parent=1 // pred_check
      _
    $region15: #{tpu_custom_call.1} parent=1 // pred_check_branch
      %53 = sbr.rel (0) target = $region17
    $region16: #{tpu_custom_call.1} parent=1 // pred_region
      %55 = vsyncadd [#allocation9], 0
      %s57 = sshll.u32 %s3, 4
      %s58 = int_to_ptr.hbm [resolvable:$true] %s57
      %s59 = sshll.u32 [#allocation8], 4
      %s60 = int_to_ptr.vmem [resolvable:$true] %s59
      %62 = dma.hbm_to_vmem [thread:$0]  %s58, 144, %s60, [#allocation9]
    $region17: #{tpu_custom_call.1} parent=1 // pred_fallthru
      _
    // Predicated region
    $region18: #{tpu_custom_call.1} parent=1 // pred_check
      _
    $region19: #{tpu_custom_call.1} parent=1 // pred_check_branch
      %64 = sbr.rel (0) target = $region21
    $region20: #{tpu_custom_call.1} parent=1 // pred_region
      %66 = dma.done [#allocation3], 256
    $region21: #{tpu_custom_call.1} parent=1 // pred_fallthru
      _
    // Predicated region
    $region22: #{tpu_custom_call.1} parent=1 // pred_check
      _
    $region23: #{tpu_custom_call.1} parent=1 // pred_check_branch
      %68 = sbr.rel (0) target = $region25
    $region24: #{tpu_custom_call.1} parent=1 // pred_region
      %70 = dma.done [#allocation6], 192
    $region25: #{tpu_custom_call.1} parent=1 // pred_fallthru
      _
    // Predicated region
    $region26: #{tpu_custom_call.1} parent=1 // pred_check
      _
    $region27: #{tpu_custom_call.1} parent=1 // pred_check_branch
      %72 = sbr.rel (0) target = $region29
    $region28: #{tpu_custom_call.1} parent=1 // pred_region
      %74 = dma.done [#allocation6], 6144
    $region29: #{tpu_custom_call.1} parent=1 // pred_fallthru
      _
    // Predicated region
    $region30: #{tpu_custom_call.1} parent=1 // pred_check
      _
    $region31: #{tpu_custom_call.1} parent=1 // pred_check_branch
      %76 = sbr.rel (0) target = $region33
    $region32: #{tpu_custom_call.1} parent=1 // pred_region
      %78 = dma.done [#allocation9], 144
    $region33: #{tpu_custom_call.1} parent=1 // pred_fallthru
      _
    %v80 = vld [vmem:[#allocation8] sm:$0x1]
    %v81 = vld [vmem:[#allocation8 + $0x1] sm:$0x7]
    %v82 = vld [vmem:[#allocation8 + $0x4] sm:$0x1]
    %v83 = vld [vmem:[#allocation8 + $0x5] sm:$0x1]
    %v84 = vld [vmem:[#allocation8 + $0x6] sm:$0x1]
    %v85 = vld [vmem:[#allocation8 + $0x7] sm:$0x1]
    %v86 = vld [vmem:[#allocation8 + $0x8] sm:$0x1]
    %v87 = vld [vmem:[#allocation2] sm:$0xff]
    %v88 = vld [vmem:[#allocation2 + $0x8] sm:$0xff]
    %v89 = vpack.c.bf16 %v88, %v87
    %v90 = vld [vmem:[#allocation5] sm:$0xf]
    %v91 = vld [vmem:[#allocation5 + $0x4] sm:$0xf]
    %v92 = vld [vmem:[#allocation5 + $0x8] sm:$0x1]
    %v94 = vperm.slane %v80, 0
    %v99 = vunpack.c.l.b16 %v90
    %v100 = vunpack.c.l.b16 %v91
    %v101 = vunpack.c.l.b16 %v92
    %v102 = vpack.c.b16 %v100, %v99
    %v103 = vpack.c.b16 %v101, %v101
    %vm105 = vcmask 146432
    %v107 = vsel %vm105, %v89, 0
    %vm109 = vcmask 1040384
    %v111 = vsel %vm109, %v103, 0
    %113 = vmatpush.bf16.msra.mxu0 0
    %114 = vmatpush.bf16.msra.mxu0 0
    %115 = vmatpush.bf16.msra.mxu0 0
    %116 = vmatpush.bf16.msra.mxu0 0
    %117 = vmatpush.bf16.msra.mxu0 0
    %118 = vmatpush.bf16.msra.mxu0 0
    %119 = vmatpush.bf16.msra.mxu0 %v111
    %120 = vmatpush.bf16.msra.mxu0 %v102
    %121 = vmatmul.bf16.gmra.mxu0 %v107
    %v122 = vpop.f32.mrf.mxu0
    %v123 = vadd.f32 %v94, %v122
    %v124 = vpop.f32.mrf.mxu0
    %v125 = vadd.f32 %v94, %v124
    %126 = vdwg.mxu0
    %v127 = vpack.c.bf16 %v125, %v123
    %v128 = vld [vmem:[#allocation7] sm:$0xff]
    %v129 = vld [vmem:[#allocation7 + $0x8] sm:$0xf]
    %v130 = vld [vmem:[#allocation7 + $0x18] sm:$0xff]
    %v131 = vld [vmem:[#allocation7 + $0x20] sm:$0xf]
    %v132 = vld [vmem:[#allocation7 + $0x30] sm:$0xff]
    %v133 = vld [vmem:[#allocation7 + $0x38] sm:$0xf]
    %v134 = vld [vmem:[#allocation7 + $0x48] sm:$0xff]
    %v135 = vld [vmem:[#allocation7 + $0x50] sm:$0xf]
    %v136 = vld [vmem:[#allocation7 + $0x60] sm:$0xff]
    %v137 = vld [vmem:[#allocation7 + $0x68] sm:$0xf]
    %v138 = vld [vmem:[#allocation7 + $0x78] sm:$0xff]
    %v139 = vld [vmem:[#allocation7 + $0x80] sm:$0xf]
    %v140 = vld [vmem:[#allocation7 + $0x90] sm:$0xff]
    %v141 = vld [vmem:[#allocation7 + $0x98] sm:$0xf]
    %v142 = vld [vmem:[#allocation7 + $0xa8] sm:$0xff]
    %v143 = vld [vmem:[#allocation7 + $0xb0] sm:$0xf]
    %v144 = vld [vmem:[#allocation7 + $0xc0] sm:$0xff]
    %v145 = vld [vmem:[#allocation7 + $0xc8] sm:$0xf]
    %v146 = vld [vmem:[#allocation7 + $0xd8] sm:$0xff]
    %v147 = vld [vmem:[#allocation7 + $0xe0] sm:$0xf]
    %v148 = vld [vmem:[#allocation7 + $0xf0] sm:$0xff]
    %v149 = vld [vmem:[#allocation7 + $0xf8] sm:$0xf]
    %v150 = vld [vmem:[#allocation7 + $0x108] sm:$0xff]
    %v151 = vld [vmem:[#allocation7 + $0x110] sm:$0xf]
    %v152 = vld [vmem:[#allocation7 + $0x120] sm:$0xff]
    %v153 = vld [vmem:[#allocation7 + $0x128] sm:$0xf]
    %v154 = vld [vmem:[#allocation7 + $0x138] sm:$0xff]
    %v155 = vld [vmem:[#allocation7 + $0x140] sm:$0xf]
    %v156 = vld [vmem:[#allocation7 + $0x150] sm:$0xff]
    %v157 = vld [vmem:[#allocation7 + $0x158] sm:$0xf]
    %v158 = vld [vmem:[#allocation7 + $0x168] sm:$0xff]
    %v159 = vld [vmem:[#allocation7 + $0x170] sm:$0xf]
    %v161 = vperm.slane %v81, 0
    %v162 = vperm.slane %v81, 1
    %v163 = vperm.slane %v81, 2
    %v199 = vunpack.c.l.b16 %v128
    %v200 = vunpack.c.h.b16 %v128
    %v201 = vunpack.c.l.b16 %v129
    %v202 = vunpack.c.l.b16 %v130
    %v203 = vunpack.c.h.b16 %v130
    %v204 = vunpack.c.l.b16 %v131
    %v205 = vunpack.c.l.b16 %v132
    %v206 = vunpack.c.h.b16 %v132
    %v207 = vunpack.c.l.b16 %v133
    %v208 = vunpack.c.l.b16 %v134
    %v209 = vunpack.c.h.b16 %v134
    %v210 = vunpack.c.l.b16 %v135
    %v211 = vunpack.c.l.b16 %v136
    %v212 = vunpack.c.h.b16 %v136
    %v213 = vunpack.c.l.b16 %v137
    %v214 = vunpack.c.l.b16 %v138
    %v215 = vunpack.c.h.b16 %v138
    %v216 = vunpack.c.l.b16 %v139
    %v217 = vunpack.c.l.b16 %v140
    %v218 = vunpack.c.h.b16 %v140
    %v219 = vunpack.c.l.b16 %v141
    %v220 = vunpack.c.l.b16 %v142
    %v221 = vunpack.c.h.b16 %v142
    %v222 = vunpack.c.l.b16 %v143
    %v223 = vunpack.c.l.b16 %v144
    %v224 = vunpack.c.h.b16 %v144
    %v225 = vunpack.c.l.b16 %v145
    %v226 = vunpack.c.l.b16 %v146
    %v227 = vunpack.c.h.b16 %v146
    %v228 = vunpack.c.l.b16 %v147
    %v229 = vunpack.c.l.b16 %v148
    %v230 = vunpack.c.h.b16 %v148
    %v231 = vunpack.c.l.b16 %v149
    %v232 = vunpack.c.l.b16 %v150
    %v233 = vunpack.c.h.b16 %v150
    %v234 = vunpack.c.l.b16 %v151
    %v235 = vunpack.c.l.b16 %v152
    %v236 = vunpack.c.h.b16 %v152
    %v237 = vunpack.c.l.b16 %v153
    %v238 = vunpack.c.l.b16 %v154
    %v239 = vunpack.c.h.b16 %v154
    %v240 = vunpack.c.l.b16 %v155
    %v241 = vunpack.c.l.b16 %v156
    %v242 = vunpack.c.h.b16 %v156
    %v243 = vunpack.c.l.b16 %v157
    %v244 = vunpack.c.l.b16 %v158
    %v245 = vunpack.c.h.b16 %v158
    %v246 = vunpack.c.l.b16 %v159
    %v247 = vpack.c.b16 %v202, %v199
    %v248 = vpack.c.b16 %v203, %v200
    %v249 = vpack.c.b16 %v204, %v201
    %v250 = vpack.c.b16 %v208, %v205
    %v251 = vpack.c.b16 %v209, %v206
    %v252 = vpack.c.b16 %v210, %v207
    %v253 = vpack.c.b16 %v214, %v211
    %v254 = vpack.c.b16 %v215, %v212
    %v255 = vpack.c.b16 %v216, %v213
    %v256 = vpack.c.b16 %v220, %v217
    %v257 = vpack.c.b16 %v221, %v218
    %v258 = vpack.c.b16 %v222, %v219
    %v259 = vpack.c.b16 %v226, %v223
    %v260 = vpack.c.b16 %v227, %v224
    %v261 = vpack.c.b16 %v228, %v225
    %v262 = vpack.c.b16 %v232, %v229
    %v263 = vpack.c.b16 %v233, %v230
    %v264 = vpack.c.b16 %v234, %v231
    %v265 = vpack.c.b16 %v238, %v235
    %v266 = vpack.c.b16 %v239, %v236
    %v267 = vpack.c.b16 %v240, %v237
    %v268 = vpack.c.b16 %v244, %v241
    %v269 = vpack.c.b16 %v245, %v242
    %v270 = vpack.c.b16 %v246, %v243
    %295 = vmatpush.bf16.msra.mxu0 %v268
    %296 = vmatpush.bf16.msra.mxu0 %v265
    %297 = vmatpush.bf16.msra.mxu0 %v262
    %298 = vmatpush.bf16.msra.mxu0 %v259
    %299 = vmatpush.bf16.msra.mxu0 %v256
    %300 = vmatpush.bf16.msra.mxu0 %v253
    %301 = vmatpush.bf16.msra.mxu0 %v250
    %302 = vmatpush.bf16.msra.mxu0 %v247
    %303 = vmatmul.bf16.gmra.mxu0 %v127
    %v304 = vpop.f32.mrf.mxu0
    %v305 = vadd.f32 %v161, %v304
    %v306 = vpop.f32.mrf.mxu0
    %v307 = vadd.f32 %v161, %v306
    %308 = vdwg.mxu0
    %309 = vmatpush.bf16.msra.mxu0 %v269
    %310 = vmatpush.bf16.msra.mxu0 %v266
    %311 = vmatpush.bf16.msra.mxu0 %v263
    %312 = vmatpush.bf16.msra.mxu0 %v260
    %313 = vmatpush.bf16.msra.mxu0 %v257
    %314 = vmatpush.bf16.msra.mxu0 %v254
    %315 = vmatpush.bf16.msra.mxu0 %v251
    %316 = vmatpush.bf16.msra.mxu0 %v248
    %317 = vmatmul.bf16.gmra.mxu0 %v127
    %v318 = vpop.f32.mrf.mxu0
    %v319 = vadd.f32 %v162, %v318
    %v320 = vpop.f32.mrf.mxu0
    %v321 = vadd.f32 %v162, %v320
    %322 = vdwg.mxu0
    %323 = vmatpush.bf16.msra.mxu0 %v270
    %324 = vmatpush.bf16.msra.mxu0 %v267
    %325 = vmatpush.bf16.msra.mxu0 %v264
    %326 = vmatpush.bf16.msra.mxu0 %v261
    %327 = vmatpush.bf16.msra.mxu0 %v258
    %328 = vmatpush.bf16.msra.mxu0 %v255
    %329 = vmatpush.bf16.msra.mxu0 %v252
    %330 = vmatpush.bf16.msra.mxu0 %v249
    %331 = vmatmul.bf16.gmra.mxu0 %v127
    %v332 = vpop.f32.mrf.mxu0
    %v333 = vadd.f32 %v163, %v332
    %v334 = vpop.f32.mrf.mxu0
    %v335 = vadd.f32 %v163, %v334
    %336 = vdwg.mxu0
    %v337 = vpack.c.bf16 %v305, %v305
    %v338 = vpack.c.bf16 %v307, %v307
    %v339 = vpack.c.bf16 %v319, %v319
    %v340 = vpack.c.bf16 %v321, %v321
    %v341 = vpack.c.bf16 %v333, %v333
    %v342 = vpack.c.bf16 %v335, %v335
    %vm343 = vcmask 261120
    %v345 = vsel %vm343, %v337, 0
    %v348 = vsel %vm343, %v339, 0
    %350 = vmatpush.bf16.xpose.msra.mxu0 0
    %351 = vmatpush.bf16.xpose.msra.mxu0 0
    %352 = vmatpush.bf16.xpose.msra.mxu0 0
    %353 = vmatpush.bf16.xpose.msra.mxu0 0
    %354 = vmatpush.bf16.xpose.msra.mxu0 0
    %355 = vmatpush.bf16.xpose.msra.mxu0 0
    %356 = vmatpush.bf16.xpose.msra.mxu0 0
    %357 = vmatpush.bf16.xpose.msra.mxu0 %v348
    %358 = vmatmul.bf16.gmra.mxu0 %v345
    %v359 = vpop.f32.mrf.mxu0
    %v360 = vadd.f32 0.0, %v359
    %v361 = vpop.f32.mrf.mxu0
    %362 = vdwg.mxu0
    %v364 = vsel %vm343, %v338, 0
    %v367 = vsel %vm343, %v340, 0
    %369 = vmatpush.bf16.xpose.msra.mxu0 0
    %370 = vmatpush.bf16.xpose.msra.mxu0 0
    %371 = vmatpush.bf16.xpose.msra.mxu0 0
    %372 = vmatpush.bf16.xpose.msra.mxu0 0
    %373 = vmatpush.bf16.xpose.msra.mxu0 0
    %374 = vmatpush.bf16.xpose.msra.mxu0 0
    %375 = vmatpush.bf16.xpose.msra.mxu0 0
    %376 = vmatpush.bf16.xpose.msra.mxu0 %v367
    %377 = vmatmul.bf16.gmra.mxu0 %v364
    %v378 = vpop.f32.mrf.mxu0
    %v379 = vadd.f32 0.0, %v378
    %v380 = vpop.f32.mrf.mxu0
    %381 = vdwg.mxu0
    %vm382 = vcmask 64512
    %v383 = vsel %vm382, %v360, -inf
    %384 = vmax.xlane.f32.xlu0 %v383
    %v385 = vpop.xlane.xlu0 %384
    %v386 = vsel %vm382, %v379, -inf
    %387 = vmax.xlane.f32.xlu0 %v386
    %v388 = vpop.xlane.xlu0 %387
    %v389 = vsub.f32 %v360, %v385
    %v390 = vsub.f32 %v379, %v388
    %v391 = vmul.f32 %v389, 1.442695
    %v392 = vpow.pop %v391
    %v393 = vmul.f32 %v390, 1.442695
    %v394 = vpow.pop %v393
    %v395 = vsel %vm382, %v392, 0.0
    %396 = vadd.xlane.f32.xlu0 %v395
    %v397 = vpop.xlane.xlu0 %396
    %v398 = vsel %vm382, %v394, 0.0
    %399 = vadd.xlane.f32.xlu0 %v398
    %v400 = vpop.xlane.xlu0 %399
    %v401 = vrcp.pop %v397
    %v402 = vrcp.pop %v400
    %v403 = vmul.f32 %v392, %v401
    %v404 = vmul.f32 %v394, %v402
    %v405 = vpack.c.bf16 %v403, %v403
    %v406 = vpack.c.bf16 %v404, %v404
    %v408 = vsel %vm382, %v405, 0
    %vm410 = vcmask 1043456
    %v412 = vsel %vm410, %v341, 0
    %414 = vmatpush.bf16.msra.mxu0 0
    %415 = vmatpush.bf16.msra.mxu0 0
    %416 = vmatpush.bf16.msra.mxu0 0
    %417 = vmatpush.bf16.msra.mxu0 0
    %418 = vmatpush.bf16.msra.mxu0 0
    %419 = vmatpush.bf16.msra.mxu0 0
    %420 = vmatpush.bf16.msra.mxu0 0
    %421 = vmatpush.bf16.msra.mxu0 %v412
    %422 = vmatmul.bf16.gmra.mxu0 %v408
    %v423 = vpop.f32.mrf.mxu0
    %v424 = vadd.f32 0.0, %v423
    %v425 = vpop.f32.mrf.mxu0
    %426 = vdwg.mxu0
    %v428 = vsel %vm382, %v406, 0
    %v431 = vsel %vm410, %v342, 0
    %433 = vmatpush.bf16.msra.mxu0 0
    %434 = vmatpush.bf16.msra.mxu0 0
    %435 = vmatpush.bf16.msra.mxu0 0
    %436 = vmatpush.bf16.msra.mxu0 0
    %437 = vmatpush.bf16.msra.mxu0 0
    %438 = vmatpush.bf16.msra.mxu0 0
    %439 = vmatpush.bf16.msra.mxu0 0
    %440 = vmatpush.bf16.msra.mxu0 %v431
    %441 = vmatmul.bf16.gmra.mxu0 %v428
    %v442 = vpop.f32.mrf.mxu0
    %v443 = vadd.f32 0.0, %v442
    %v444 = vpop.f32.mrf.mxu0
    %445 = vdwg.mxu0
    %v446 = vpack.c.bf16 %v443, %v424
    %v447 = vld [vmem:[#allocation7 + $0xc] sm:$0xf]
    %v448 = vld [vmem:[#allocation7 + $0x24] sm:$0xf]
    %v449 = vld [vmem:[#allocation7 + $0x3c] sm:$0xf]
    %v450 = vld [vmem:[#allocation7 + $0x54] sm:$0xf]
    %v452 = vunpack.c.l.b16 %v337
    %v453 = vpack.c.b16 %v452, %v452
    %454 = vrot.lane.b32.xlu0 %v453, 96
    %v455 = vpop.permute.xlu0 %454
    %v457 = vunpack.c.l.b16 %v339
    %v458 = vpack.c.b16 %v457, %v457
    %459 = vrot.lane.b32.xlu0 %v458, 96
    %v460 = vpop.permute.xlu0 %459
    %v462 = vsel %vm343, %v455, 0
    %v465 = vsel %vm343, %v460, 0
    %467 = vmatpush.bf16.xpose.msra.mxu0 0
    %468 = vmatpush.bf16.xpose.msra.mxu0 0
    %469 = vmatpush.bf16.xpose.msra.mxu0 0
    %470 = vmatpush.bf16.xpose.msra.mxu0 0
    %471 = vmatpush.bf16.xpose.msra.mxu0 0
    %472 = vmatpush.bf16.xpose.msra.mxu0 0
    %473 = vmatpush.bf16.xpose.msra.mxu0 0
    %474 = vmatpush.bf16.xpose.msra.mxu0 %v465
    %475 = vmatmul.bf16.gmra.mxu0 %v462
    %v476 = vpop.f32.mrf.mxu0
    %v477 = vadd.f32 0.0, %v476
    %v478 = vpop.f32.mrf.mxu0
    %479 = vdwg.mxu0
    %v481 = vunpack.c.l.b16 %v338
    %v482 = vpack.c.b16 %v481, %v481
    %483 = vrot.lane.b32.xlu0 %v482, 96
    %v484 = vpop.permute.xlu0 %483
    %v486 = vunpack.c.l.b16 %v340
    %v487 = vpack.c.b16 %v486, %v486
    %488 = vrot.lane.b32.xlu0 %v487, 96
    %v489 = vpop.permute.xlu0 %488
    %v491 = vsel %vm343, %v484, 0
    %v494 = vsel %vm343, %v489, 0
    %496 = vmatpush.bf16.xpose.msra.mxu0 0
    %497 = vmatpush.bf16.xpose.msra.mxu0 0
    %498 = vmatpush.bf16.xpose.msra.mxu0 0
    %499 = vmatpush.bf16.xpose.msra.mxu0 0
    %500 = vmatpush.bf16.xpose.msra.mxu0 0
    %501 = vmatpush.bf16.xpose.msra.mxu0 0
    %502 = vmatpush.bf16.xpose.msra.mxu0 0
    %503 = vmatpush.bf16.xpose.msra.mxu0 %v494
    %504 = vmatmul.bf16.gmra.mxu0 %v491
    %v505 = vpop.f32.mrf.mxu0
    %v506 = vadd.f32 0.0, %v505
    %v507 = vpop.f32.mrf.mxu0
    %508 = vdwg.mxu0
    %v509 = vsel %vm382, %v477, -inf
    %510 = vmax.xlane.f32.xlu0 %v509
    %v511 = vpop.xlane.xlu0 %510
    %v512 = vsel %vm382, %v506, -inf
    %513 = vmax.xlane.f32.xlu0 %v512
    %v514 = vpop.xlane.xlu0 %513
    %v515 = vsub.f32 %v477, %v511
    %v516 = vsub.f32 %v506, %v514
    %v517 = vmul.f32 %v515, 1.442695
    %v518 = vpow.pop %v517
    %v519 = vmul.f32 %v516, 1.442695
    %v520 = vpow.pop %v519
    %v521 = vsel %vm382, %v518, 0.0
    %522 = vadd.xlane.f32.xlu0 %v521
    %v523 = vpop.xlane.xlu0 %522
    %v524 = vsel %vm382, %v520, 0.0
    %525 = vadd.xlane.f32.xlu0 %v524
    %v526 = vpop.xlane.xlu0 %525
    %v527 = vrcp.pop %v523
    %v528 = vrcp.pop %v526
    %v529 = vmul.f32 %v518, %v527
    %v530 = vmul.f32 %v520, %v528
    %v531 = vpack.c.bf16 %v529, %v529
    %v532 = vpack.c.bf16 %v530, %v530
    %v534 = vunpack.c.l.b16 %v341
    %v535 = vpack.c.b16 %v534, %v534
    %536 = vrot.lane.b32.xlu0 %v535, 96
    %v537 = vpop.permute.xlu0 %536
    %v539 = vsel %vm382, %v531, 0
    %v542 = vsel %vm410, %v537, 0
    %544 = vmatpush.bf16.msra.mxu0 0
    %545 = vmatpush.bf16.msra.mxu0 0
    %546 = vmatpush.bf16.msra.mxu0 0
    %547 = vmatpush.bf16.msra.mxu0 0
    %548 = vmatpush.bf16.msra.mxu0 0
    %549 = vmatpush.bf16.msra.mxu0 0
    %550 = vmatpush.bf16.msra.mxu0 0
    %551 = vmatpush.bf16.msra.mxu0 %v542
    %552 = vmatmul.bf16.gmra.mxu0 %v539
    %v553 = vpop.f32.mrf.mxu0
    %v554 = vadd.f32 0.0, %v553
    %v555 = vpop.f32.mrf.mxu0
    %556 = vdwg.mxu0
    %v558 = vunpack.c.l.b16 %v342
    %v559 = vpack.c.b16 %v558, %v558
    %560 = vrot.lane.b32.xlu0 %v559, 96
    %v561 = vpop.permute.xlu0 %560
    %v563 = vsel %vm382, %v532, 0
    %v566 = vsel %vm410, %v561, 0
    %568 = vmatpush.bf16.msra.mxu0 0
    %569 = vmatpush.bf16.msra.mxu0 0
    %570 = vmatpush.bf16.msra.mxu0 0
    %571 = vmatpush.bf16.msra.mxu0 0
    %572 = vmatpush.bf16.msra.mxu0 0
    %573 = vmatpush.bf16.msra.mxu0 0
    %574 = vmatpush.bf16.msra.mxu0 0
    %575 = vmatpush.bf16.msra.mxu0 %v566
    %576 = vmatmul.bf16.gmra.mxu0 %v563
    %v577 = vpop.f32.mrf.mxu0
    %v578 = vadd.f32 0.0, %v577
    %v579 = vpop.f32.mrf.mxu0
    %580 = vdwg.mxu0
    %v581 = vpack.c.bf16 %v578, %v554
    %v582 = vld [vmem:[#allocation7 + $0x6c] sm:$0xf]
    %v583 = vld [vmem:[#allocation7 + $0x84] sm:$0xf]
    %v584 = vld [vmem:[#allocation7 + $0x9c] sm:$0xf]
    %v585 = vld [vmem:[#allocation7 + $0xb4] sm:$0xf]
    %v590 = vunpack.c.l.b16 %v582
    %v591 = vunpack.c.l.b16 %v583
    %v592 = vunpack.c.l.b16 %v584
    %v593 = vunpack.c.l.b16 %v585
    %v594 = vpack.c.b16 %v591, %v590
    %v595 = vpack.c.b16 %v593, %v592
    %v599 = vsel %vm343, %v581, 0
    %601 = vmatpush.bf16.msra.mxu0 0
    %602 = vmatpush.bf16.msra.mxu0 0
    %603 = vmatpush.bf16.msra.mxu0 0
    %604 = vmatpush.bf16.msra.mxu0 0
    %605 = vmatpush.bf16.msra.mxu0 0
    %606 = vmatpush.bf16.msra.mxu0 0
    %607 = vmatpush.bf16.msra.mxu0 %v595
    %608 = vmatpush.bf16.msra.mxu0 %v594
    %609 = vmatmul.bf16.gmra.mxu0 %v599
    %v610 = vpop.f32.mrf.mxu0
    %v611 = vadd.f32 0.0, %v610
    %v612 = vpop.f32.mrf.mxu0
    %v613 = vadd.f32 0.0, %v612
    %614 = vdwg.mxu0
    %v619 = vunpack.c.l.b16 %v447
    %v620 = vunpack.c.l.b16 %v448
    %v621 = vunpack.c.l.b16 %v449
    %v622 = vunpack.c.l.b16 %v450
    %v623 = vpack.c.b16 %v620, %v619
    %v624 = vpack.c.b16 %v622, %v621
    %v628 = vsel %vm343, %v446, 0
    %630 = vmatpush.bf16.msra.mxu0 0
    %631 = vmatpush.bf16.msra.mxu0 0
    %632 = vmatpush.bf16.msra.mxu0 0
    %633 = vmatpush.bf16.msra.mxu0 0
    %634 = vmatpush.bf16.msra.mxu0 0
    %635 = vmatpush.bf16.msra.mxu0 0
    %636 = vmatpush.bf16.msra.mxu0 %v624
    %637 = vmatpush.bf16.msra.mxu0 %v623
    %638 = vmatmul.bf16.gmra.mxu0 %v628
    %v639 = vpop.f32.mrf.mxu0
    %v640 = vadd.f32 %v611, %v639
    %v641 = vpop.f32.mrf.mxu0
    %v642 = vadd.f32 %v613, %v641
    %643 = vdwg.mxu0
    %644 = vrot.lane.b32.xlu0 %v453, 64
    %v645 = vpop.permute.xlu0 %644
    %646 = vrot.lane.b32.xlu0 %v458, 64
    %v647 = vpop.permute.xlu0 %646
    %v649 = vsel %vm343, %v645, 0
    %v652 = vsel %vm343, %v647, 0
    %654 = vmatpush.bf16.xpose.msra.mxu0 0
    %655 = vmatpush.bf16.xpose.msra.mxu0 0
    %656 = vmatpush.bf16.xpose.msra.mxu0 0
    %657 = vmatpush.bf16.xpose.msra.mxu0 0
    %658 = vmatpush.bf16.xpose.msra.mxu0 0
    %659 = vmatpush.bf16.xpose.msra.mxu0 0
    %660 = vmatpush.bf16.xpose.msra.mxu0 0
    %661 = vmatpush.bf16.xpose.msra.mxu0 %v652
    %662 = vmatmul.bf16.gmra.mxu0 %v649
    %v663 = vpop.f32.mrf.mxu0
    %v664 = vadd.f32 0.0, %v663
    %v665 = vpop.f32.mrf.mxu0
    %666 = vdwg.mxu0
    %667 = vrot.lane.b32.xlu0 %v482, 64
    %v668 = vpop.permute.xlu0 %667
    %669 = vrot.lane.b32.xlu0 %v487, 64
    %v670 = vpop.permute.xlu0 %669
    %v672 = vsel %vm343, %v668, 0
    %v675 = vsel %vm343, %v670, 0
    %677 = vmatpush.bf16.xpose.msra.mxu0 0
    %678 = vmatpush.bf16.xpose.msra.mxu0 0
    %679 = vmatpush.bf16.xpose.msra.mxu0 0
    %680 = vmatpush.bf16.xpose.msra.mxu0 0
    %681 = vmatpush.bf16.xpose.msra.mxu0 0
    %682 = vmatpush.bf16.xpose.msra.mxu0 0
    %683 = vmatpush.bf16.xpose.msra.mxu0 0
    %684 = vmatpush.bf16.xpose.msra.mxu0 %v675
    %685 = vmatmul.bf16.gmra.mxu0 %v672
    %v686 = vpop.f32.mrf.mxu0
    %v687 = vadd.f32 0.0, %v686
    %v688 = vpop.f32.mrf.mxu0
    %689 = vdwg.mxu0
    %v690 = vsel %vm382, %v664, -inf
    %691 = vmax.xlane.f32.xlu0 %v690
    %v692 = vpop.xlane.xlu0 %691
    %v693 = vsel %vm382, %v687, -inf
    %694 = vmax.xlane.f32.xlu0 %v693
    %v695 = vpop.xlane.xlu0 %694
    %v696 = vsub.f32 %v664, %v692
    %v697 = vsub.f32 %v687, %v695
    %v698 = vmul.f32 %v696, 1.442695
    %v699 = vpow.pop %v698
    %v700 = vmul.f32 %v697, 1.442695
    %v701 = vpow.pop %v700
    %v702 = vsel %vm382, %v699, 0.0
    %703 = vadd.xlane.f32.xlu0 %v702
    %v704 = vpop.xlane.xlu0 %703
    %v705 = vsel %vm382, %v701, 0.0
    %706 = vadd.xlane.f32.xlu0 %v705
    %v707 = vpop.xlane.xlu0 %706
    %v708 = vrcp.pop %v704
    %v709 = vrcp.pop %v707
    %v710 = vmul.f32 %v699, %v708
    %v711 = vmul.f32 %v701, %v709
    %v712 = vpack.c.bf16 %v710, %v710
    %v713 = vpack.c.bf16 %v711, %v711
    %714 = vrot.lane.b32.xlu0 %v535, 64
    %v715 = vpop.permute.xlu0 %714
    %v717 = vsel %vm382, %v712, 0
    %v720 = vsel %vm410, %v715, 0
    %722 = vmatpush.bf16.msra.mxu0 0
    %723 = vmatpush.bf16.msra.mxu0 0
    %724 = vmatpush.bf16.msra.mxu0 0
    %725 = vmatpush.bf16.msra.mxu0 0
    %726 = vmatpush.bf16.msra.mxu0 0
    %727 = vmatpush.bf16.msra.mxu0 0
    %728 = vmatpush.bf16.msra.mxu0 0
    %729 = vmatpush.bf16.msra.mxu0 %v720
    %730 = vmatmul.bf16.gmra.mxu0 %v717
    %v731 = vpop.f32.mrf.mxu0
    %v732 = vadd.f32 0.0, %v731
    %v733 = vpop.f32.mrf.mxu0
    %734 = vdwg.mxu0
    %735 = vrot.lane.b32.xlu0 %v559, 64
    %v736 = vpop.permute.xlu0 %735
    %v738 = vsel %vm382, %v713, 0
    %v741 = vsel %vm410, %v736, 0
    %743 = vmatpush.bf16.msra.mxu0 0
    %744 = vmatpush.bf16.msra.mxu0 0
    %745 = vmatpush.bf16.msra.mxu0 0
    %746 = vmatpush.bf16.msra.mxu0 0
    %747 = vmatpush.bf16.msra.mxu0 0
    %748 = vmatpush.bf16.msra.mxu0 0
    %749 = vmatpush.bf16.msra.mxu0 0
    %750 = vmatpush.bf16.msra.mxu0 %v741
    %751 = vmatmul.bf16.gmra.mxu0 %v738
    %v752 = vpop.f32.mrf.mxu0
    %v753 = vadd.f32 0.0, %v752
    %v754 = vpop.f32.mrf.mxu0
    %755 = vdwg.mxu0
    %v756 = vpack.c.bf16 %v753, %v732
    %v757 = vld [vmem:[#allocation7 + $0xcc] sm:$0xf]
    %v758 = vld [vmem:[#allocation7 + $0xe4] sm:$0xf]
    %v759 = vld [vmem:[#allocation7 + $0xfc] sm:$0xf]
    %v760 = vld [vmem:[#allocation7 + $0x114] sm:$0xf]
    %v765 = vunpack.c.l.b16 %v757
    %v766 = vunpack.c.l.b16 %v758
    %v767 = vunpack.c.l.b16 %v759
    %v768 = vunpack.c.l.b16 %v760
    %v769 = vpack.c.b16 %v766, %v765
    %v770 = vpack.c.b16 %v768, %v767
    %v774 = vsel %vm343, %v756, 0
    %776 = vmatpush.bf16.msra.mxu0 0
    %777 = vmatpush.bf16.msra.mxu0 0
    %778 = vmatpush.bf16.msra.mxu0 0
    %779 = vmatpush.bf16.msra.mxu0 0
    %780 = vmatpush.bf16.msra.mxu0 0
    %781 = vmatpush.bf16.msra.mxu0 0
    %782 = vmatpush.bf16.msra.mxu0 %v770
    %783 = vmatpush.bf16.msra.mxu0 %v769
    %784 = vmatmul.bf16.gmra.mxu0 %v774
    %v785 = vpop.f32.mrf.mxu0
    %v786 = vadd.f32 0.0, %v785
    %v787 = vpop.f32.mrf.mxu0
    %v788 = vadd.f32 0.0, %v787
    %789 = vdwg.mxu0
    %v790 = vadd.f32 %v640, %v786
    %v791 = vadd.f32 %v642, %v788
    %792 = vrot.lane.b32.xlu0 %v453, 32
    %v793 = vpop.permute.xlu0 %792
    %794 = vrot.lane.b32.xlu0 %v458, 32
    %v795 = vpop.permute.xlu0 %794
    %v797 = vsel %vm343, %v793, 0
    %v800 = vsel %vm343, %v795, 0
    %802 = vmatpush.bf16.xpose.msra.mxu0 0
    %803 = vmatpush.bf16.xpose.msra.mxu0 0
    %804 = vmatpush.bf16.xpose.msra.mxu0 0
    %805 = vmatpush.bf16.xpose.msra.mxu0 0
    %806 = vmatpush.bf16.xpose.msra.mxu0 0
    %807 = vmatpush.bf16.xpose.msra.mxu0 0
    %808 = vmatpush.bf16.xpose.msra.mxu0 0
    %809 = vmatpush.bf16.xpose.msra.mxu0 %v800
    %810 = vmatmul.bf16.gmra.mxu0 %v797
    %v811 = vpop.f32.mrf.mxu0
    %v812 = vadd.f32 0.0, %v811
    %v813 = vpop.f32.mrf.mxu0
    %814 = vdwg.mxu0
    %815 = vrot.lane.b32.xlu0 %v482, 32
    %v816 = vpop.permute.xlu0 %815
    %817 = vrot.lane.b32.xlu0 %v487, 32
    %v818 = vpop.permute.xlu0 %817
    %v820 = vsel %vm343, %v816, 0
    %v823 = vsel %vm343, %v818, 0
    %825 = vmatpush.bf16.xpose.msra.mxu0 0
    %826 = vmatpush.bf16.xpose.msra.mxu0 0
    %827 = vmatpush.bf16.xpose.msra.mxu0 0
    %828 = vmatpush.bf16.xpose.msra.mxu0 0
    %829 = vmatpush.bf16.xpose.msra.mxu0 0
    %830 = vmatpush.bf16.xpose.msra.mxu0 0
    %831 = vmatpush.bf16.xpose.msra.mxu0 0
    %832 = vmatpush.bf16.xpose.msra.mxu0 %v823
    %833 = vmatmul.bf16.gmra.mxu0 %v820
    %v834 = vpop.f32.mrf.mxu0
    %v835 = vadd.f32 0.0, %v834
    %v836 = vpop.f32.mrf.mxu0
    %837 = vdwg.mxu0
    %v838 = vsel %vm382, %v812, -inf
    %839 = vmax.xlane.f32.xlu0 %v838
    %v840 = vpop.xlane.xlu0 %839
    %v841 = vsel %vm382, %v835, -inf
    %842 = vmax.xlane.f32.xlu0 %v841
    %v843 = vpop.xlane.xlu0 %842
    %v844 = vsub.f32 %v812, %v840
    %v845 = vsub.f32 %v835, %v843
    %v846 = vmul.f32 %v844, 1.442695
    %v847 = vpow.pop %v846
    %v848 = vmul.f32 %v845, 1.442695
    %v849 = vpow.pop %v848
    %v850 = vsel %vm382, %v847, 0.0
    %851 = vadd.xlane.f32.xlu0 %v850
    %v852 = vpop.xlane.xlu0 %851
    %v853 = vsel %vm382, %v849, 0.0
    %854 = vadd.xlane.f32.xlu0 %v853
    %v855 = vpop.xlane.xlu0 %854
    %v856 = vrcp.pop %v852
    %v857 = vrcp.pop %v855
    %v858 = vmul.f32 %v847, %v856
    %v859 = vmul.f32 %v849, %v857
    %v860 = vpack.c.bf16 %v858, %v858
    %v861 = vpack.c.bf16 %v859, %v859
    %862 = vrot.lane.b32.xlu0 %v535, 32
    %v863 = vpop.permute.xlu0 %862
    %v865 = vsel %vm382, %v860, 0
    %v868 = vsel %vm410, %v863, 0
    %870 = vmatpush.bf16.msra.mxu0 0
    %871 = vmatpush.bf16.msra.mxu0 0
    %872 = vmatpush.bf16.msra.mxu0 0
    %873 = vmatpush.bf16.msra.mxu0 0
    %874 = vmatpush.bf16.msra.mxu0 0
    %875 = vmatpush.bf16.msra.mxu0 0
    %876 = vmatpush.bf16.msra.mxu0 0
    %877 = vmatpush.bf16.msra.mxu0 %v868
    %878 = vmatmul.bf16.gmra.mxu0 %v865
    %v879 = vpop.f32.mrf.mxu0
    %v880 = vadd.f32 0.0, %v879
    %v881 = vpop.f32.mrf.mxu0
    %882 = vdwg.mxu0
    %883 = vrot.lane.b32.xlu0 %v559, 32
    %v884 = vpop.permute.xlu0 %883
    %v886 = vsel %vm382, %v861, 0
    %v889 = vsel %vm410, %v884, 0
    %891 = vmatpush.bf16.msra.mxu0 0
    %892 = vmatpush.bf16.msra.mxu0 0
    %893 = vmatpush.bf16.msra.mxu0 0
    %894 = vmatpush.bf16.msra.mxu0 0
    %895 = vmatpush.bf16.msra.mxu0 0
    %896 = vmatpush.bf16.msra.mxu0 0
    %897 = vmatpush.bf16.msra.mxu0 0
    %898 = vmatpush.bf16.msra.mxu0 %v889
    %899 = vmatmul.bf16.gmra.mxu0 %v886
    %v900 = vpop.f32.mrf.mxu0
    %v901 = vadd.f32 0.0, %v900
    %v902 = vpop.f32.mrf.mxu0
    %903 = vdwg.mxu0
    %v904 = vpack.c.bf16 %v901, %v880
    %v905 = vld [vmem:[#allocation7 + $0x12c] sm:$0xf]
    %v906 = vld [vmem:[#allocation7 + $0x144] sm:$0xf]
    %v907 = vld [vmem:[#allocation7 + $0x15c] sm:$0xf]
    %v908 = vld [vmem:[#allocation7 + $0x174] sm:$0xf]
    %v913 = vunpack.c.l.b16 %v905
    %v914 = vunpack.c.l.b16 %v906
    %v915 = vunpack.c.l.b16 %v907
    %v916 = vunpack.c.l.b16 %v908
    %v917 = vpack.c.b16 %v914, %v913
    %v918 = vpack.c.b16 %v916, %v915
    %v922 = vsel %vm343, %v904, 0
    %924 = vmatpush.bf16.msra.mxu0 0
    %925 = vmatpush.bf16.msra.mxu0 0
    %926 = vmatpush.bf16.msra.mxu0 0
    %927 = vmatpush.bf16.msra.mxu0 0
    %928 = vmatpush.bf16.msra.mxu0 0
    %929 = vmatpush.bf16.msra.mxu0 0
    %930 = vmatpush.bf16.msra.mxu0 %v918
    %931 = vmatpush.bf16.msra.mxu0 %v917
    %932 = vmatmul.bf16.gmra.mxu0 %v922
    %v933 = vpop.f32.mrf.mxu0
    %v934 = vadd.f32 0.0, %v933
    %v935 = vpop.f32.mrf.mxu0
    %v936 = vadd.f32 0.0, %v935
    %937 = vdwg.mxu0
    %v938 = vadd.f32 %v790, %v934
    %v939 = vadd.f32 %v791, %v936
    %v940 = vadd.f32 %v123, %v938
    %v941 = vadd.f32 %v125, %v939
    %v943 = vperm.slane %v82, 0
    %v945 = vadd.f32 %v940, %v943
    %v946 = vadd.f32 %v941, %v943
    %947 = vadd.xlane.f32.xlu0 %v945
    %v948 = vpop.xlane.xlu0 %947
    %949 = vadd.xlane.f32.xlu0 %v946
    %v950 = vpop.xlane.xlu0 %949
    %v951 = vrcp.pop 128.0
    %v952 = vmul.f32 128.0, %v951
    %v953 = vsub.f32 1.0, %v952
    %v954 = vmul.f32 %v951, %v953
    %v955 = vadd.f32 %v951, %v954
    %vm956 = vweird.f32 %v951
    %v957 = vsel %vm956, %v951, %v955
    %v958 = vmul.f32 %v948, %v957
    %v959 = vmul.f32 %v950, %v957
    %v960 = vsub.f32 %v945, %v958
    %v961 = vsub.f32 %v946, %v959
    %v962 = vmul.f32 %v960, %v960
    %v963 = vmul.f32 %v961, %v961
    %964 = vadd.xlane.f32.xlu0 %v962
    %v965 = vpop.xlane.xlu0 %964
    %966 = vadd.xlane.f32.xlu0 %v963
    %v967 = vpop.xlane.xlu0 %966
    %v968 = vmul.f32 %v965, %v957
    %v969 = vmul.f32 %v967, %v957
    %v970 = vadd.f32 %v968, 1e-05
    %v971 = vadd.f32 %v969, 1e-05
    %v972 = vrsqrt.pop %v970
    %v973 = vmul.f32 %v972, %v970
    %v974 = vmul.f32 %v973, %v972
    %v975 = vmul.f32 0.5, %v974
    %v976 = vsub.f32 1.5, %v975
    %v977 = vmul.f32 %v972, %v976
    %vm978 = vweird.f32 %v970
    %vm979 = vweird.f32 %v972
    %vm980 = vmor %vm978, %vm979
    %v981 = vsel %vm980, %v972, %v977
    %v982 = vrsqrt.pop %v971
    %v983 = vmul.f32 %v982, %v971
    %v984 = vmul.f32 %v983, %v982
    %v985 = vmul.f32 0.5, %v984
    %v986 = vsub.f32 1.5, %v985
    %v987 = vmul.f32 %v982, %v986
    %vm988 = vweird.f32 %v971
    %vm989 = vweird.f32 %v982
    %vm990 = vmor %vm988, %vm989
    %v991 = vsel %vm990, %v982, %v987
    %v992 = vmul.f32 %v960, %v981
    %v993 = vmul.f32 %v961, %v991
    %v995 = vperm.slane %v83, 0
    %v997 = vmul.f32 %v992, %v995
    %v998 = vmul.f32 %v993, %v995
    %v1000 = vperm.slane %v84, 0
    %v1002 = vadd.f32 %v997, %v1000
    %v1003 = vadd.f32 %v998, %v1000
    %v1004 = vpack.c.bf16 %v1003, %v1002
    %v1005 = vld [vmem:[#allocation7 + $0x10] sm:$0xf]
    %v1006 = vld [vmem:[#allocation7 + $0x28] sm:$0xf]
    %v1007 = vld [vmem:[#allocation7 + $0x40] sm:$0xf]
    %v1008 = vld [vmem:[#allocation7 + $0x58] sm:$0xf]
    %v1009 = vld [vmem:[#allocation7 + $0x70] sm:$0xf]
    %v1010 = vld [vmem:[#allocation7 + $0x88] sm:$0xf]
    %v1011 = vld [vmem:[#allocation7 + $0xa0] sm:$0xf]
    %v1012 = vld [vmem:[#allocation7 + $0xb8] sm:$0xf]
    %v1013 = vld [vmem:[#allocation7 + $0xd0] sm:$0xf]
    %v1014 = vld [vmem:[#allocation7 + $0xe8] sm:$0xf]
    %v1015 = vld [vmem:[#allocation7 + $0x100] sm:$0xf]
    %v1016 = vld [vmem:[#allocation7 + $0x118] sm:$0xf]
    %v1017 = vld [vmem:[#allocation7 + $0x130] sm:$0xf]
    %v1018 = vld [vmem:[#allocation7 + $0x148] sm:$0xf]
    %v1019 = vld [vmem:[#allocation7 + $0x160] sm:$0xf]
    %v1020 = vld [vmem:[#allocation7 + $0x178] sm:$0xf]
    %v1022 = vperm.slane %v85, 0
    %v1040 = vunpack.c.l.b16 %v1005
    %v1041 = vunpack.c.l.b16 %v1006
    %v1042 = vunpack.c.l.b16 %v1007
    %v1043 = vunpack.c.l.b16 %v1008
    %v1044 = vunpack.c.l.b16 %v1009
    %v1045 = vunpack.c.l.b16 %v1010
    %v1046 = vunpack.c.l.b16 %v1011
    %v1047 = vunpack.c.l.b16 %v1012
    %v1048 = vunpack.c.l.b16 %v1013
    %v1049 = vunpack.c.l.b16 %v1014
    %v1050 = vunpack.c.l.b16 %v1015
    %v1051 = vunpack.c.l.b16 %v1016
    %v1052 = vunpack.c.l.b16 %v1017
    %v1053 = vunpack.c.l.b16 %v1018
    %v1054 = vunpack.c.l.b16 %v1019
    %v1055 = vunpack.c.l.b16 %v1020
    %v1056 = vpack.c.b16 %v1041, %v1040
    %v1057 = vpack.c.b16 %v1043, %v1042
    %v1058 = vpack.c.b16 %v1045, %v1044
    %v1059 = vpack.c.b16 %v1047, %v1046
    %v1060 = vpack.c.b16 %v1049, %v1048
    %v1061 = vpack.c.b16 %v1051, %v1050
    %v1062 = vpack.c.b16 %v1053, %v1052
    %v1063 = vpack.c.b16 %v1055, %v1054
    %1072 = vmatpush.bf16.msra.mxu0 %v1063
    %1073 = vmatpush.bf16.msra.mxu0 %v1062
    %1074 = vmatpush.bf16.msra.mxu0 %v1061
    %1075 = vmatpush.bf16.msra.mxu0 %v1060
    %1076 = vmatpush.bf16.msra.mxu0 %v1059
    %1077 = vmatpush.bf16.msra.mxu0 %v1058
    %1078 = vmatpush.bf16.msra.mxu0 %v1057
    %1079 = vmatpush.bf16.msra.mxu0 %v1056
    %1080 = vmatmul.bf16.gmra.mxu0 %v1004
    %v1081 = vpop.f32.mrf.mxu0
    %v1082 = vadd.f32 %v1022, %v1081
    %v1083 = vpop.f32.mrf.mxu0
    %v1084 = vadd.f32 %v1022, %v1083
    %1085 = vdwg.mxu0
    %v1086 = vmax.f32 %v1082, 0.0
    %v1087 = vmax.f32 %v1084, 0.0
    %v1088 = vpack.c.bf16 %v1087, %v1086
    %v1089 = vld [vmem:[#allocation7 + $0x14] sm:$0xf]
    %v1090 = vld [vmem:[#allocation7 + $0x2c] sm:$0xf]
    %v1091 = vld [vmem:[#allocation7 + $0x44] sm:$0xf]
    %v1092 = vld [vmem:[#allocation7 + $0x5c] sm:$0xf]
    %v1093 = vld [vmem:[#allocation7 + $0x74] sm:$0xf]
    %v1094 = vld [vmem:[#allocation7 + $0x8c] sm:$0xf]
    %v1095 = vld [vmem:[#allocation7 + $0xa4] sm:$0xf]
    %v1096 = vld [vmem:[#allocation7 + $0xbc] sm:$0xf]
    %v1097 = vld [vmem:[#allocation7 + $0xd4] sm:$0xf]
    %v1098 = vld [vmem:[#allocation7 + $0xec] sm:$0xf]
    %v1099 = vld [vmem:[#allocation7 + $0x104] sm:$0xf]
    %v1100 = vld [vmem:[#allocation7 + $0x11c] sm:$0xf]
    %v1101 = vld [vmem:[#allocation7 + $0x134] sm:$0xf]
    %v1102 = vld [vmem:[#allocation7 + $0x14c] sm:$0xf]
    %v1103 = vld [vmem:[#allocation7 + $0x164] sm:$0xf]
    %v1104 = vld [vmem:[#allocation7 + $0x17c] sm:$0xf]
    %v1106 = vperm.slane %v86, 0
    %v1124 = vunpack.c.l.b16 %v1089
    %v1125 = vunpack.c.l.b16 %v1090
    %v1126 = vunpack.c.l.b16 %v1091
    %v1127 = vunpack.c.l.b16 %v1092
    %v1128 = vunpack.c.l.b16 %v1093
    %v1129 = vunpack.c.l.b16 %v1094
    %v1130 = vunpack.c.l.b16 %v1095
    %v1131 = vunpack.c.l.b16 %v1096
    %v1132 = vunpack.c.l.b16 %v1097
    %v1133 = vunpack.c.l.b16 %v1098
    %v1134 = vunpack.c.l.b16 %v1099
    %v1135 = vunpack.c.l.b16 %v1100
    %v1136 = vunpack.c.l.b16 %v1101
    %v1137 = vunpack.c.l.b16 %v1102
    %v1138 = vunpack.c.l.b16 %v1103
    %v1139 = vunpack.c.l.b16 %v1104
    %v1140 = vpack.c.b16 %v1125, %v1124
    %v1141 = vpack.c.b16 %v1127, %v1126
    %v1142 = vpack.c.b16 %v1129, %v1128
    %v1143 = vpack.c.b16 %v1131, %v1130
    %v1144 = vpack.c.b16 %v1133, %v1132
    %v1145 = vpack.c.b16 %v1135, %v1134
    %v1146 = vpack.c.b16 %v1137, %v1136
    %v1147 = vpack.c.b16 %v1139, %v1138
    %1156 = vmatpush.bf16.msra.mxu0 %v1147
    %1157 = vmatpush.bf16.msra.mxu0 %v1146
    %1158 = vmatpush.bf16.msra.mxu0 %v1145
    %1159 = vmatpush.bf16.msra.mxu0 %v1144
    %1160 = vmatpush.bf16.msra.mxu0 %v1143
    %1161 = vmatpush.bf16.msra.mxu0 %v1142
    %1162 = vmatpush.bf16.msra.mxu0 %v1141
    %1163 = vmatpush.bf16.msra.mxu0 %v1140
    %1164 = vmatmul.bf16.gmra.mxu0 %v1088
    %v1165 = vpop.f32.mrf.mxu0
    %v1166 = vadd.f32 %v1106, %v1165
    %v1167 = vpop.f32.mrf.mxu0
    %v1168 = vadd.f32 %v1106, %v1167
    %1169 = vdwg.mxu0
    %v1170 = vadd.f32 %v1166, %v1002
    %v1171 = vadd.f32 %v1168, %v1003
    %1172 = vst [vmem:[#allocation10] sm:$0xff] %v1170
    %1173 = vst [vmem:[#allocation10 + $0x8] sm:$0xff] %v1171
    // Predicated region
    $region34: #{tpu_custom_call.1} parent=1 // pred_check
      _
    $region35: #{tpu_custom_call.1} parent=1 // pred_check_branch
      %1175 = sbr.rel (0) target = $region37
    $region36: #{tpu_custom_call.1} parent=1 // pred_region
      %1177 = vsyncadd [#allocation4], 0
      %s1178 = sshll.u32 [#allocation10], 4
      %s1179 = int_to_ptr.vmem [resolvable:$true] %s1178
      %s1180 = sshll.u32 %s4, 4
      %s1181 = int_to_ptr.hbm [resolvable:$true] %s1180
      %1186 = dma.vmem_to_hbm [thread:$0]  %s1179, 256, %s1181, [#allocation4], 128, 128, 8
    $region37: #{tpu_custom_call.1} parent=1 // pred_fallthru
      _
    // Predicated region
    $region38: #{tpu_custom_call.1} parent=1 // pred_check
      _
    $region39: #{tpu_custom_call.1} parent=1 // pred_check_branch
      %1188 = sbr.rel (0) target = $region41
    $region40: #{tpu_custom_call.1} parent=1 // pred_region
      %1190 = dma.done [#allocation4], 256
    $region41: #{tpu_custom_call.1} parent=1 // pred_fallthru
      _
    %1191 = vsyncpa [#allocation3], 1
    %1192 = vsyncpa [#allocation6], 1
    %1193 = vsyncpa [#allocation9], 1
    %1194 = vsyncpa [#allocation4], 1

</llo_original>
